<compile_context>
chip_gen: v5e
topology: v5e:2x2
jax: 0.10.0
libtpu: 0.0.40
codegen_flags: <defaults>
</compile_context>

<pallas_src>
import functools
import math

import jax
import jax.numpy as jnp
import numpy as np
from jax.experimental import pallas as pl
from jax.experimental.pallas import tpu as pltpu

_INV_SQRT2 = 1.0 / math.sqrt(2.0)
_VMEM_LIMIT = 64 * 1024 * 1024
_CPARAMS = pltpu.CompilerParams(dimension_semantics=("parallel",),
                                vmem_limit_bytes=_VMEM_LIMIT)


# ----------------------------------------------------------------------------
# small helpers
# ----------------------------------------------------------------------------
def _full_spec(arr):
    """Whole-array VMEM block (constant across the grid -> stays resident)."""
    nd = arr.ndim
    return pl.BlockSpec(arr.shape, lambda *g: (0,) * nd)


def _pick_tile(n, target=512):
    """Largest row tile <= target that is a multiple of 8 and divides n."""
    if n <= target:
        return n
    t = target - (target % 8)
    while t >= 8:
        if n % t == 0:
            return t
        t -= 8
    return n


def _head_major_perm(D, num_heads):
    """Permutation: component-concat [c*D + d] -> head-major [h*4*hd + c*hd + dh]."""
    hd = D // num_heads
    perm = np.empty(4 * D, dtype=np.int32)
    p = 0
    for h in range(num_heads):
        for c in range(4):
            for dh in range(hd):
                perm[p] = c * D + h * hd + dh
                p += 1
    return perm


# ----------------------------------------------------------------------------
# in-kernel building blocks (operate on loaded values)
# ----------------------------------------------------------------------------
def _quat_ln(y, g, bt, D):
    """Quaternion layer-norm on y:[N,4D] with gamma/beta:[1,4D] (concat layout)."""
    comps = [y[:, c * D:(c + 1) * D] for c in range(4)]
    ss = comps[0] * comps[0]
    for c in range(1, 4):
        ss = ss + comps[c] * comps[c]
    norm = jnp.sqrt(ss + 1e-6)
    inv = pl.reciprocal(norm + 1e-6, approx=True)
    yn = jnp.concatenate([c_ * inv for c_ in comps], axis=-1)
    return g * yn + bt


def _attn_ln_core(q, k, v, x_res, w_o, b_o, g, bt, num_heads, D, scale):
    """Per-batch multi-head quaternion attention + out-proj + residual + LN.

    q/k/v are in HEAD-MAJOR layout: [*, num_heads * 4 * head_dim]; x_res and
    the LN params are in component-concat layout; w_o's rows are permuted to
    accept head-major input and emit component-concat output.
    """
    hd = D // num_heads
    fh = 4 * hd
    outs = []
    for h in range(num_heads):
        qh = q[:, h * fh:(h + 1) * fh]                  # [Tq, 4*hd]
        kh = k[:, h * fh:(h + 1) * fh]                  # [Tk, 4*hd]
        vh = v[:, h * fh:(h + 1) * fh]                  # [Tk, 4*hd]
        s = jax.lax.dot_general(qh, kh, (((1,), (1,)), ((), ())),
                                preferred_element_type=jnp.float32) * scale
        s = s - jnp.max(s, axis=-1, keepdims=True)
        p = jnp.exp(s)
        p = p * pl.reciprocal(jnp.sum(p, axis=-1, keepdims=True), approx=True)
        outs.append(jnp.dot(p, vh, preferred_element_type=jnp.float32))

    attn = outs[0] if num_heads == 1 else jnp.concatenate(outs, axis=-1)
    y = jnp.dot(attn, w_o, preferred_element_type=jnp.float32) + b_o + x_res
    return _quat_ln(y, g, bt, D)


# ----------------------------------------------------------------------------
# Pallas kernels
# ----------------------------------------------------------------------------
def _make_self_attn_kernel(D, num_heads, scale):
    F = 4 * D

    def kernel(x_ref, wqkv_ref, bqkv_ref, wo_ref, bo_ref, g_ref, bt_ref, o_ref):
        x = x_ref[...]                                           # [T, 4D]
        qkv = jnp.dot(x, wqkv_ref[...],
                      preferred_element_type=jnp.float32) + bqkv_ref[...]
        q = qkv[:, 0 * F:1 * F]
        k = qkv[:, 1 * F:2 * F]
        v = qkv[:, 2 * F:3 * F]
        o_ref[...] = _attn_ln_core(q, k, v, x, wo_ref[...], bo_ref[...],
                                   g_ref[...], bt_ref[...], num_heads, D,
                                   scale).astype(o_ref.dtype)
    return kernel


def _make_cross_attn_kernel(D, num_heads, scale):
    F = 4 * D

    def kernel(x_ref, m_ref, wq_ref, bq_ref, wkv_ref, bkv_ref,
               wo_ref, bo_ref, g_ref, bt_ref, o_ref):
        x = x_ref[...]                                           # [T,  4D]
        m = m_ref[...]                                           # [Tm, 4D]
        q = jnp.dot(x, wq_ref[...],
                    preferred_element_type=jnp.float32) + bq_ref[...]
        kv = jnp.dot(m, wkv_ref[...],
                     preferred_element_type=jnp.float32) + bkv_ref[...]
        k = kv[:, 0 * F:1 * F]
        v = kv[:, 1 * F:2 * F]
        o_ref[...] = _attn_ln_core(q, k, v, x, wo_ref[...], bo_ref[...],
                                   g_ref[...], bt_ref[...], num_heads, D,
                                   scale).astype(o_ref.dtype)
    return kernel


def _make_ff_kernel(D, Hd):
    def kernel(x_ref, w1_ref, b1_ref, ab_ref, w2_ref, b2_ref,
               g_ref, bt_ref, o_ref):
        x = x_ref[...]                                           # [TN, 4D]
        h = jnp.dot(x, w1_ref[...],
                    preferred_element_type=jnp.float32) + b1_ref[...]
        comps = [h[:, c * Hd:(c + 1) * Hd] for c in range(4)]
        ss = comps[0] * comps[0]
        for c in range(1, 4):
            ss = ss + comps[c] * comps[c]
        norm = jnp.sqrt(ss)                                      # [TN, Hd]
        garg = norm + ab_ref[...]
        gelu = 0.5 * garg * (1.0 + jax.lax.erf(garg * _INV_SQRT2))
        scl = gelu * pl.reciprocal(norm + 1e-6, approx=True)
        hm = jnp.concatenate([c_ * scl for c_ in comps], axis=-1)
        y = jnp.dot(hm, w2_ref[...],
                    preferred_element_type=jnp.float32) + b2_ref[...] + x
        o_ref[...] = _quat_ln(y, g_ref[...], bt_ref[...], D).astype(o_ref.dtype)
    return kernel


# ----------------------------------------------------------------------------
# Pallas-backed blocks (wrappers)
# ----------------------------------------------------------------------------
def _self_attn_block(x_c, p, num_heads):
    """x_c:[B,T,4D] -> LN(x + out_proj(MHA(x,x,x))) : [B,T,4D]."""
    B, T, F4 = x_c.shape
    D = F4 // 4
    hd = D // num_heads
    scale = 1.0 / math.sqrt(hd * 4 + 1e-6 + 1e-6)
    return pl.pallas_call(
        _make_self_attn_kernel(D, num_heads, scale),
        grid=(B,),
        in_specs=[pl.BlockSpec((None, T, F4), lambda b: (b, 0, 0)),
                  _full_spec(p['wqkv']), _full_spec(p['bqkv']),
                  _full_spec(p['wo']), _full_spec(p['bo']),
                  _full_spec(p['g']), _full_spec(p['bt'])],
        out_specs=pl.BlockSpec((None, T, F4), lambda b: (b, 0, 0)),
        out_shape=jax.ShapeDtypeStruct((B, T, F4), x_c.dtype),
        compiler_params=_CPARAMS,
    )(x_c, p['wqkv'], p['bqkv'], p['wo'], p['bo'], p['g'], p['bt'])


def _cross_attn_block(x_c, m_c, p, num_heads):
    """x_c:[B,T,4D] m_c:[B,Tm,4D] -> LN(x + out_proj(MHA(x,m,m)))."""
    B, T, F4 = x_c.shape
    Tm = m_c.shape[1]
    D = F4 // 4
    hd = D // num_heads
    scale = 1.0 / math.sqrt(hd * 4 + 1e-6 + 1e-6)
    return pl.pallas_call(
        _make_cross_attn_kernel(D, num_heads, scale),
        grid=(B,),
        in_specs=[pl.BlockSpec((None, T, F4), lambda b: (b, 0, 0)),
                  pl.BlockSpec((None, Tm, F4), lambda b: (b, 0, 0)),
                  _full_spec(p['wq']), _full_spec(p['bq']),
                  _full_spec(p['wkv']), _full_spec(p['bkv']),
                  _full_spec(p['wo']), _full_spec(p['bo']),
                  _full_spec(p['g']), _full_spec(p['bt'])],
        out_specs=pl.BlockSpec((None, T, F4), lambda b: (b, 0, 0)),
        out_shape=jax.ShapeDtypeStruct((B, T, F4), x_c.dtype),
        compiler_params=_CPARAMS,
    )(x_c, m_c, p['wq'], p['bq'], p['wkv'], p['bkv'],
      p['wo'], p['bo'], p['g'], p['bt'])


def _ff_block(x_c, p):
    """x_c:[B,T,4D] -> LN(x + fc2(ModReLU(fc1(x)))) : [B,T,4D]."""
    B, T, F4 = x_c.shape
    D = F4 // 4
    Hd = p['ab'].shape[-1]
    N = B * T
    xf = x_c.reshape(N, F4)
    tile = _pick_tile(N)
    out = pl.pallas_call(
        _make_ff_kernel(D, Hd),
        grid=(N // tile,),
        in_specs=[pl.BlockSpec((tile, F4), lambda i: (i, 0)),
                  _full_spec(p['w1']), _full_spec(p['b1']),
                  _full_spec(p['ab']),
                  _full_spec(p['w2']), _full_spec(p['b2']),
                  _full_spec(p['g']), _full_spec(p['bt'])],
        out_specs=pl.BlockSpec((tile, F4), lambda i: (i, 0)),
        out_shape=jax.ShapeDtypeStruct((N, F4), x_c.dtype),
        compiler_params=_CPARAMS,
    )(xf, p['w1'], p['b1'], p['ab'], p['w2'], p['b2'], p['g'], p['bt'])
    return out.reshape(B, T, F4)


# ----------------------------------------------------------------------------
# layout conversion + parameter preprocessing (one-time, outside kernels)
# ----------------------------------------------------------------------------
def _to_cat(x):
    """[B,T,D,4] -> [B,T,4*D]  (component-major concat)."""
    B, T, D, _ = x.shape
    return jnp.transpose(x, (0, 1, 3, 2)).reshape(B, T, 4 * D)


def _from_cat(xc, D):
    """[B,T,4*D] -> [B,T,D,4]."""
    B, T, _ = xc.shape
    return jnp.transpose(xc.reshape(B, T, 4, D), (0, 1, 3, 2))


def _hamilton_weight(w):
    """w:[4,Dout,Din] (r,i,j,k torch F.linear weights) -> [4*Din, 4*Dout]."""
    wr, wi, wj, wk = w[0].T, w[1].T, w[2].T, w[3].T          # [Din, Dout]
    row_r = jnp.concatenate([wr, wi, wj, wk], axis=1)
    row_i = jnp.concatenate([-wi, wr, -wk, wj], axis=1)
    row_j = jnp.concatenate([-wj, wk, wr, -wi], axis=1)
    row_k = jnp.concatenate([-wk, -wj, wi, wr], axis=1)
    return jnp.concatenate([row_r, row_i, row_j, row_k], axis=0)


def _cat_vec(v):
    """[D,4] -> [1, 4*D] component-major."""
    return jnp.transpose(v).reshape(1, -1)


def preprocess_params(params, num_heads):
    """Pre-bake signed Hamilton block matrices + fused QKV / KV weights.

    Q/K/V projection output columns (and the out-proj input rows) are permuted
    to a head-major layout so per-head slices are contiguous inside kernels.
    """
    D = params['norm1']['gamma'].shape[0]
    perm = _head_major_perm(D, num_heads)

    def lin(p):
        return _hamilton_weight(p['w']), _cat_vec(p['b'])

    def attn_params(ap):
        wq, bq = lin(ap['q']); wk, bk = lin(ap['k'])
        wv, bv = lin(ap['v']); wo, bo = lin(ap['o'])
        # head-major outputs for q/k/v, head-major input rows for out-proj
        wq, wk, wv = wq[:, perm], wk[:, perm], wv[:, perm]
        bq, bk, bv = bq[:, perm], bk[:, perm], bv[:, perm]
        wo = wo[perm, :]
        return wq, bq, wk, bk, wv, bv, wo, bo

    wq, bq, wk, bk, wv, bv, wo, bo = attn_params(params['self_attn'])
    self_p = {'wqkv': jnp.concatenate([wq, wk, wv], axis=1),
              'bqkv': jnp.concatenate([bq, bk, bv], axis=1),
              'wo': wo, 'bo': bo,
              'g': _cat_vec(params['norm1']['gamma']),
              'bt': _cat_vec(params['norm1']['beta'])}

    wq, bq, wk, bk, wv, bv, wo, bo = attn_params(params['cross_attn'])
    cross_p = {'wq': wq, 'bq': bq,
               'wkv': jnp.concatenate([wk, wv], axis=1),
               'bkv': jnp.concatenate([bk, bv], axis=1),
               'wo': wo, 'bo': bo,
               'g': _cat_vec(params['norm2']['gamma']),
               'bt': _cat_vec(params['norm2']['beta'])}

    ff = params['ff']
    w1, b1 = lin(ff['fc1']); w2, b2 = lin(ff['fc2'])
    ff_p = {'w1': w1, 'b1': b1, 'ab': ff['act_bias'][None, :],
            'w2': w2, 'b2': b2,
            'g': _cat_vec(params['norm3']['gamma']),
            'bt': _cat_vec(params['norm3']['beta'])}

    return {'self': self_p, 'cross': cross_p, 'ff': ff_p}


def quaternion_decoder_layer(x, memory, pp, num_heads):
    """x:[B,T,D,4]  memory:[B,Tm,D,4]  ->  [B,T,D,4]."""
    D = x.shape[2]
    xc = _to_cat(x)
    mc = _to_cat(memory)
    h = _self_attn_block(xc, pp['self'], num_heads)
    h = _cross_attn_block(h, mc, pp['cross'], num_heads)
    h = _ff_block(h, pp['ff'])
    return _from_cat(h, D)


# ----------------------------------------------------------------------------
# Deterministic parameter init (mirrors module __init__ / reset_parameters)
# ----------------------------------------------------------------------------
def _xavier(key, dout, din):
    limit = math.sqrt(6.0 / (din + dout))
    return jax.random.uniform(key, (dout, din), jnp.float32, -limit, limit)


def _init_qlinear(key, din, dout):
    keys = jax.random.split(key, 4)
    w = jnp.stack([_xavier(k, dout, din) for k in keys], axis=0)  # [4,dout,din]
    b = jnp.zeros((dout, 4), jnp.float32)
    return {'w': w, 'b': b}


def _init_mha(key, D):
    kq, kk, kv, ko = jax.random.split(key, 4)
    return {'q': _init_qlinear(kq, D, D), 'k': _init_qlinear(kk, D, D),
            'v': _init_qlinear(kv, D, D), 'o': _init_qlinear(ko, D, D)}


def _init_norm(D):
    return {'gamma': jnp.ones((D, 4), jnp.float32),
            'beta': jnp.zeros((D, 4), jnp.float32)}


def init_decoder_params(key, embed_dim, hidden_dim):
    k1, k2, k3, k4 = jax.random.split(key, 4)
    return {
        'self_attn': _init_mha(k1, embed_dim),
        'cross_attn': _init_mha(k2, embed_dim),
        'norm1': _init_norm(embed_dim),
        'norm2': _init_norm(embed_dim),
        'norm3': _init_norm(embed_dim),
        'ff': {'fc1': _init_qlinear(k3, embed_dim, hidden_dim),
               'fc2': _init_qlinear(k4, hidden_dim, embed_dim),
               'act_bias': jnp.zeros((hidden_dim,), jnp.float32)},
    }


# ----------------------------------------------------------------------------
# Pure-JAX reference (mirrors the PyTorch code, for correctness check)
# ----------------------------------------------------------------------------
def _ref_qlinear(x, w, b):
    r, i, j, k = x[..., 0], x[..., 1], x[..., 2], x[..., 3]
    wr, wi, wj, wk = w[0], w[1], w[2], w[3]
    lin = lambda a, W: jnp.einsum('btd,od->bto', a, W)
    r_out = lin(r, wr) - lin(i, wi) - lin(j, wj) - lin(k, wk)
    i_out = lin(r, wi) + lin(i, wr) + lin(j, wk) - lin(k, wj)
    j_out = lin(r, wj) - lin(i, wk) + lin(j, wr) + lin(k, wi)
    k_out = lin(r, wk) + lin(i, wj) - lin(j, wi) + lin(k, wr)
    return jnp.stack([r_out, i_out, j_out, k_out], axis=-1) + b[None, None]


def _ref_modrelu(x, bias):
    norm = jnp.sqrt(jnp.sum(x * x, axis=-1))
    scale = jax.nn.gelu(norm + bias[None, None, :], approximate=False) / (norm + 1e-6)
    return x * scale[..., None]


def _ref_qln(x, gamma, beta):
    norm = jnp.sqrt(jnp.sum(x * x, axis=-1, keepdims=True) + 1e-6)
    return gamma[None, None] * (x / (norm + 1e-6)) + beta[None, None]


def _ref_mha(xq, xkv, p, H):
    def split(t):
        B, T, D, Q = t.shape
        return jnp.transpose(t.reshape(B, T, H, D // H, Q), (0, 2, 1, 3, 4))
    q = split(_ref_qlinear(xq, p['q']['w'], p['q']['b']))
    k = split(_ref_qlinear(xkv, p['k']['w'], p['k']['b']))
    v = split(_ref_qlinear(xkv, p['v']['w'], p['v']['b']))
    hd = q.shape[3]
    s = jnp.einsum('bhqfd,bhkfd->bhqk', q, k) / math.sqrt(hd * 4 + 1e-6 + 1e-6)
    w = jax.nn.softmax(s, axis=-1)
    o = jnp.einsum('bhqk,bhkfd->bhqfd', w, v)
    B, Hh, Tq, hd, Q = o.shape
    o = jnp.transpose(o, (0, 2, 1, 3, 4)).reshape(B, Tq, Hh * hd, Q)
    return _ref_qlinear(o, p['o']['w'], p['o']['b'])


def _ref_ff(x, p):
    h = _ref_qlinear(x, p['fc1']['w'], p['fc1']['b'])
    h = _ref_modrelu(h, p['act_bias'])
    return _ref_qlinear(h, p['fc2']['w'], p['fc2']['b'])


def _ref_decoder(x, memory, params, H):
    x = _ref_qln(x + _ref_mha(x, x, params['self_attn'], H),
                 params['norm1']['gamma'], params['norm1']['beta'])
    x = _ref_qln(x + _ref_mha(x, memory, params['cross_attn'], H),
                 params['norm2']['gamma'], params['norm2']['beta'])
    x = _ref_qln(x + _ref_ff(x, params['ff']),
                 params['norm3']['gamma'], params['norm3']['beta'])
    return x


# ----------------------------------------------------------------------------
if __name__ == "__main__":
    B, T, Tm = 2, 8, 12
    embed_dim, hidden_dim, num_heads = 16, 32, 2

    key = jax.random.PRNGKey(0)
    kp, kx, km = jax.random.split(key, 3)
    params = init_decoder_params(kp, embed_dim, hidden_dim)
    pp = preprocess_params(params, num_heads)
    x = jax.random.normal(kx, (B, T, embed_dim, 4), jnp.float32)
    memory = jax.random.normal(km, (B, Tm, embed_dim, 4), jnp.float32)

    fwd = jax.jit(functools.partial(quaternion_decoder_layer,
                                    num_heads=num_heads))
    out = jax.block_until_ready(fwd(x, memory, pp))
    assert out.shape == (B, T, embed_dim, 4)

    ref = jax.block_until_ready(_ref_decoder(x, memory, params, num_heads))
    np.testing.assert_allclose(np.asarray(out), np.asarray(ref),
                               rtol=2e-2, atol=2e-2)

    print("KERNEL_OK")
</pallas_src>

<mosaic_0001>
module attributes {stable_mosaic.version = 11 : i64} {
  func.func @kernel(%arg0: i32, %arg1: memref<1x8x64xf32, #tpu.memory_space<vmem>>, %arg2: memref<64x192xf32, #tpu.memory_space<vmem>>, %arg3: memref<1x192xf32, #tpu.memory_space<vmem>>, %arg4: memref<64x64xf32, #tpu.memory_space<vmem>>, %arg5: memref<1x64xf32, #tpu.memory_space<vmem>>, %arg6: memref<1x64xf32, #tpu.memory_space<vmem>>, %arg7: memref<1x64xf32, #tpu.memory_space<vmem>>, %arg8: memref<1x8x64xf32, #tpu.memory_space<vmem>>) attributes {dimension_semantics = [#tpu.dimension_semantics<parallel>], iteration_bounds = array<i64: 2>, scalar_prefetch = 0 : i64, scratch_operands = 0 : i64, tpu.core_type = #tpu.core_type<tc>, window_params = [{transform_indices = @transform_0, window_bounds = array<i64: 1, 8, 64>}, {pipeline_mode = #tpu.pipeline_mode<synchronous>, transform_indices = @transform_1, window_bounds = array<i64: 64, 192>}, {pipeline_mode = #tpu.pipeline_mode<synchronous>, transform_indices = @transform_2, window_bounds = array<i64: 1, 192>}, {pipeline_mode = #tpu.pipeline_mode<synchronous>, transform_indices = @transform_3, window_bounds = array<i64: 64, 64>}, {pipeline_mode = #tpu.pipeline_mode<synchronous>, transform_indices = @transform_4, window_bounds = array<i64: 1, 64>}, {pipeline_mode = #tpu.pipeline_mode<synchronous>, transform_indices = @transform_5, window_bounds = array<i64: 1, 64>}, {pipeline_mode = #tpu.pipeline_mode<synchronous>, transform_indices = @transform_6, window_bounds = array<i64: 1, 64>}, {transform_indices = @transform_7, window_bounds = array<i64: 1, 8, 64>}]} {
    %c0 = arith.constant 0 : index
    %c0_0 = arith.constant 0 : index
    %c0_1 = arith.constant 0 : index
    %0 = vector.load %arg1[%c0, %c0_0, %c0_1] : memref<1x8x64xf32, #tpu.memory_space<vmem>>, vector<1x8x64xf32>
    %1 = vector.shape_cast %0 : vector<1x8x64xf32> to vector<8x64xf32>
    %c0_2 = arith.constant 0 : index
    %c0_3 = arith.constant 0 : index
    %2 = vector.load %arg2[%c0_2, %c0_3] : memref<64x192xf32, #tpu.memory_space<vmem>>, vector<64x192xf32>
    %cst = arith.constant dense<0.000000e+00> : vector<8x192xf32>
    %3 = tpu.matmul %1, %2, %cst {dimension_numbers = #tpu.dot_dimension_numbers<[1], [0], [0], [1], [0, 0, 1, 1], [], []>} : vector<8x64xf32>, vector<64x192xf32>, vector<8x192xf32> -> vector<8x192xf32>
    %c0_4 = arith.constant 0 : index
    %c0_5 = arith.constant 0 : index
    %4 = vector.load %arg3[%c0_4, %c0_5] : memref<1x192xf32, #tpu.memory_space<vmem>>, vector<1x192xf32>
    %5 = vector.broadcast %4 : vector<1x192xf32> to vector<8x192xf32>
    %6 = arith.addf %3, %5 : vector<8x192xf32>
    %7 = vector.extract_strided_slice %6 {offsets = [0, 0], sizes = [8, 64], strides = [1, 1]} : vector<8x192xf32> to vector<8x64xf32>
    %8 = vector.extract_strided_slice %6 {offsets = [0, 64], sizes = [8, 64], strides = [1, 1]} : vector<8x192xf32> to vector<8x64xf32>
    %9 = vector.extract_strided_slice %6 {offsets = [0, 128], sizes = [8, 64], strides = [1, 1]} : vector<8x192xf32> to vector<8x64xf32>
    %c0_6 = arith.constant 0 : index
    %c0_7 = arith.constant 0 : index
    %10 = vector.load %arg4[%c0_6, %c0_7] : memref<64x64xf32, #tpu.memory_space<vmem>>, vector<64x64xf32>
    %c0_8 = arith.constant 0 : index
    %c0_9 = arith.constant 0 : index
    %11 = vector.load %arg5[%c0_8, %c0_9] : memref<1x64xf32, #tpu.memory_space<vmem>>, vector<1x64xf32>
    %c0_10 = arith.constant 0 : index
    %c0_11 = arith.constant 0 : index
    %12 = vector.load %arg6[%c0_10, %c0_11] : memref<1x64xf32, #tpu.memory_space<vmem>>, vector<1x64xf32>
    %c0_12 = arith.constant 0 : index
    %c0_13 = arith.constant 0 : index
    %13 = vector.load %arg7[%c0_12, %c0_13] : memref<1x64xf32, #tpu.memory_space<vmem>>, vector<1x64xf32>
    %14 = vector.extract_strided_slice %7 {offsets = [0, 0], sizes = [8, 32], strides = [1, 1]} : vector<8x64xf32> to vector<8x32xf32>
    %15 = vector.extract_strided_slice %8 {offsets = [0, 0], sizes = [8, 32], strides = [1, 1]} : vector<8x64xf32> to vector<8x32xf32>
    %16 = vector.extract_strided_slice %9 {offsets = [0, 0], sizes = [8, 32], strides = [1, 1]} : vector<8x64xf32> to vector<8x32xf32>
    %cst_14 = arith.constant dense<0.000000e+00> : vector<8x8xf32>
    %17 = tpu.matmul %14, %15, %cst_14 {dimension_numbers = #tpu.dot_dimension_numbers<[1], [1], [0], [0], [0, 0, 1, 0], [], []>} : vector<8x32xf32>, vector<8x32xf32>, vector<8x8xf32> -> vector<8x8xf32>
    %cst_15 = arith.constant 0.176776692 : f32
    %18 = vector.broadcast %cst_15 : f32 to vector<8x8xf32>
    %19 = arith.mulf %17, %18 : vector<8x8xf32>
    %cst_16 = arith.constant dense<0xFF800000> : vector<8xf32>
    %20 = vector.multi_reduction <maximumf>, %19, %cst_16 [1] : vector<8x8xf32> to vector<8xf32>
    %21 = vector.shape_cast %20 : vector<8xf32> to vector<8x1xf32>
    %22 = vector.broadcast %21 : vector<8x1xf32> to vector<8x8xf32>
    %23 = arith.subf %19, %22 : vector<8x8xf32>
    %24 = math.exp %23 : vector<8x8xf32>
    %cst_17 = arith.constant dense<0.000000e+00> : vector<8xf32>
    %25 = vector.multi_reduction <add>, %24, %cst_17 [1] : vector<8x8xf32> to vector<8xf32>
    %26 = vector.shape_cast %25 : vector<8xf32> to vector<8x1xf32>
    %27 = tpu.reciprocal %26 {approx = true} : vector<8x1xf32> -> vector<8x1xf32>
    %28 = vector.broadcast %27 : vector<8x1xf32> to vector<8x8xf32>
    %29 = arith.mulf %24, %28 : vector<8x8xf32>
    %cst_18 = arith.constant dense<0.000000e+00> : vector<8x32xf32>
    %30 = tpu.matmul %29, %16, %cst_18 {dimension_numbers = #tpu.dot_dimension_numbers<[1], [0], [0], [1], [0, 0, 1, 1], [], []>} : vector<8x8xf32>, vector<8x32xf32>, vector<8x32xf32> -> vector<8x32xf32>
    %31 = vector.extract_strided_slice %7 {offsets = [0, 32], sizes = [8, 32], strides = [1, 1]} : vector<8x64xf32> to vector<8x32xf32>
    %32 = vector.extract_strided_slice %8 {offsets = [0, 32], sizes = [8, 32], strides = [1, 1]} : vector<8x64xf32> to vector<8x32xf32>
    %33 = vector.extract_strided_slice %9 {offsets = [0, 32], sizes = [8, 32], strides = [1, 1]} : vector<8x64xf32> to vector<8x32xf32>
    %cst_19 = arith.constant dense<0.000000e+00> : vector<8x8xf32>
    %34 = tpu.matmul %31, %32, %cst_19 {dimension_numbers = #tpu.dot_dimension_numbers<[1], [1], [0], [0], [0, 0, 1, 0], [], []>} : vector<8x32xf32>, vector<8x32xf32>, vector<8x8xf32> -> vector<8x8xf32>
    %cst_20 = arith.constant 0.176776692 : f32
    %35 = vector.broadcast %cst_20 : f32 to vector<8x8xf32>
    %36 = arith.mulf %34, %35 : vector<8x8xf32>
    %cst_21 = arith.constant dense<0xFF800000> : vector<8xf32>
    %37 = vector.multi_reduction <maximumf>, %36, %cst_21 [1] : vector<8x8xf32> to vector<8xf32>
    %38 = vector.shape_cast %37 : vector<8xf32> to vector<8x1xf32>
    %39 = vector.broadcast %38 : vector<8x1xf32> to vector<8x8xf32>
    %40 = arith.subf %36, %39 : vector<8x8xf32>
    %41 = math.exp %40 : vector<8x8xf32>
    %cst_22 = arith.constant dense<0.000000e+00> : vector<8xf32>
    %42 = vector.multi_reduction <add>, %41, %cst_22 [1] : vector<8x8xf32> to vector<8xf32>
    %43 = vector.shape_cast %42 : vector<8xf32> to vector<8x1xf32>
    %44 = tpu.reciprocal %43 {approx = true} : vector<8x1xf32> -> vector<8x1xf32>
    %45 = vector.broadcast %44 : vector<8x1xf32> to vector<8x8xf32>
    %46 = arith.mulf %41, %45 : vector<8x8xf32>
    %cst_23 = arith.constant dense<0.000000e+00> : vector<8x32xf32>
    %47 = tpu.matmul %46, %33, %cst_23 {dimension_numbers = #tpu.dot_dimension_numbers<[1], [0], [0], [1], [0, 0, 1, 1], [], []>} : vector<8x8xf32>, vector<8x32xf32>, vector<8x32xf32> -> vector<8x32xf32>
    %48 = tpu.concatenate %30, %47 in 1 : vector<8x32xf32>, vector<8x32xf32> -> vector<8x64xf32>
    %cst_24 = arith.constant dense<0.000000e+00> : vector<8x64xf32>
    %49 = tpu.matmul %48, %10, %cst_24 {dimension_numbers = #tpu.dot_dimension_numbers<[1], [0], [0], [1], [0, 0, 1, 1], [], []>} : vector<8x64xf32>, vector<64x64xf32>, vector<8x64xf32> -> vector<8x64xf32>
    %50 = vector.broadcast %11 : vector<1x64xf32> to vector<8x64xf32>
    %51 = arith.addf %49, %50 : vector<8x64xf32>
    %52 = arith.addf %51, %1 : vector<8x64xf32>
    %53 = vector.extract_strided_slice %52 {offsets = [0, 0], sizes = [8, 16], strides = [1, 1]} : vector<8x64xf32> to vector<8x16xf32>
    %54 = vector.extract_strided_slice %52 {offsets = [0, 16], sizes = [8, 16], strides = [1, 1]} : vector<8x64xf32> to vector<8x16xf32>
    %55 = vector.extract_strided_slice %52 {offsets = [0, 32], sizes = [8, 16], strides = [1, 1]} : vector<8x64xf32> to vector<8x16xf32>
    %56 = vector.extract_strided_slice %52 {offsets = [0, 48], sizes = [8, 16], strides = [1, 1]} : vector<8x64xf32> to vector<8x16xf32>
    %57 = arith.mulf %53, %53 : vector<8x16xf32>
    %58 = arith.mulf %54, %54 : vector<8x16xf32>
    %59 = arith.addf %57, %58 : vector<8x16xf32>
    %60 = arith.mulf %55, %55 : vector<8x16xf32>
    %61 = arith.addf %59, %60 : vector<8x16xf32>
    %62 = arith.mulf %56, %56 : vector<8x16xf32>
    %63 = arith.addf %61, %62 : vector<8x16xf32>
    %cst_25 = arith.constant 9.99999997E-7 : f32
    %64 = vector.broadcast %cst_25 : f32 to vector<8x16xf32>
    %65 = arith.addf %63, %64 : vector<8x16xf32>
    %66 = math.sqrt %65 : vector<8x16xf32>
    %cst_26 = arith.constant 9.99999997E-7 : f32
    %67 = vector.broadcast %cst_26 : f32 to vector<8x16xf32>
    %68 = arith.addf %66, %67 : vector<8x16xf32>
    %69 = tpu.reciprocal %68 {approx = true} : vector<8x16xf32> -> vector<8x16xf32>
    %70 = arith.mulf %53, %69 : vector<8x16xf32>
    %71 = arith.mulf %54, %69 : vector<8x16xf32>
    %72 = arith.mulf %55, %69 : vector<8x16xf32>
    %73 = arith.mulf %56, %69 : vector<8x16xf32>
    %74 = tpu.concatenate %70, %71, %72, %73 in 1 : vector<8x16xf32>, vector<8x16xf32>, vector<8x16xf32>, vector<8x16xf32> -> vector<8x64xf32>
    %75 = vector.broadcast %12 : vector<1x64xf32> to vector<8x64xf32>
    %76 = arith.mulf %75, %74 : vector<8x64xf32>
    %77 = vector.broadcast %13 : vector<1x64xf32> to vector<8x64xf32>
    %78 = arith.addf %76, %77 : vector<8x64xf32>
    %c0_27 = arith.constant 0 : index
    %c0_28 = arith.constant 0 : index
    %c0_29 = arith.constant 0 : index
    %79 = vector.load %arg8[%c0_27, %c0_28, %c0_29] : memref<1x8x64xf32, #tpu.memory_space<vmem>>, vector<1x8x64xf32>
    %80 = vector.shape_cast %79 : vector<1x8x64xf32> to vector<8x64xf32>
    %81 = vector.shape_cast %78 : vector<8x64xf32> to vector<1x8x64xf32>
    tpu.vector_store %arg8[%c0_27, %c0_28, %c0_29], %81 {strides = array<i32>} : memref<1x8x64xf32, #tpu.memory_space<vmem>>, vector<1x8x64xf32>,
    return
  }
  func.func @transform_0(%arg0: i32) -> (i32, i32, i32) {
    %c0_i32 = arith.constant 0 : i32
    %c0_i32_0 = arith.constant 0 : i32
    %c0_i32_1 = arith.constant 0 : i32
    return %arg0, %c0_i32, %c0_i32_0 : i32, i32, i32
  }
  func.func @transform_1(%arg0: i32) -> (i32, i32) {
    %c0_i32 = arith.constant 0 : i32
    %c0_i32_0 = arith.constant 0 : i32
    %c0_i32_1 = arith.constant 0 : i32
    return %c0_i32, %c0_i32_0 : i32, i32
  }
  func.func @transform_2(%arg0: i32) -> (i32, i32) {
    %c0_i32 = arith.constant 0 : i32
    %c0_i32_0 = arith.constant 0 : i32
    %c0_i32_1 = arith.constant 0 : i32
    return %c0_i32, %c0_i32_0 : i32, i32
  }
  func.func @transform_3(%arg0: i32) -> (i32, i32) {
    %c0_i32 = arith.constant 0 : i32
    %c0_i32_0 = arith.constant 0 : i32
    %c0_i32_1 = arith.constant 0 : i32
    return %c0_i32, %c0_i32_0 : i32, i32
  }
  func.func @transform_4(%arg0: i32) -> (i32, i32) {
    %c0_i32 = arith.constant 0 : i32
    %c0_i32_0 = arith.constant 0 : i32
    %c0_i32_1 = arith.constant 0 : i32
    return %c0_i32, %c0_i32_0 : i32, i32
  }
  func.func @transform_5(%arg0: i32) -> (i32, i32) {
    %c0_i32 = arith.constant 0 : i32
    %c0_i32_0 = arith.constant 0 : i32
    %c0_i32_1 = arith.constant 0 : i32
    return %c0_i32, %c0_i32_0 : i32, i32
  }
  func.func @transform_6(%arg0: i32) -> (i32, i32) {
    %c0_i32 = arith.constant 0 : i32
    %c0_i32_0 = arith.constant 0 : i32
    %c0_i32_1 = arith.constant 0 : i32
    return %c0_i32, %c0_i32_0 : i32, i32
  }
  func.func @transform_7(%arg0: i32) -> (i32, i32, i32) {
    %c0_i32 = arith.constant 0 : i32
    %c0_i32_0 = arith.constant 0 : i32
    %c0_i32_1 = arith.constant 0 : i32
    return %arg0, %c0_i32, %c0_i32_0 : i32, i32, i32
  }
}

module attributes {stable_mosaic.version = 11 : i64} {
  func.func @kernel(%arg0: i32, %arg1: memref<1x8x64xf32, #tpu.memory_space<vmem>>, %arg2: memref<1x12x64xf32, #tpu.memory_space<vmem>>, %arg3: memref<64x64xf32, #tpu.memory_space<vmem>>, %arg4: memref<1x64xf32, #tpu.memory_space<vmem>>, %arg5: memref<64x128xf32, #tpu.memory_space<vmem>>, %arg6: memref<1x128xf32, #tpu.memory_space<vmem>>, %arg7: memref<64x64xf32, #tpu.memory_space<vmem>>, %arg8: memref<1x64xf32, #tpu.memory_space<vmem>>, %arg9: memref<1x64xf32, #tpu.memory_space<vmem>>, %arg10: memref<1x64xf32, #tpu.memory_space<vmem>>, %arg11: memref<1x8x64xf32, #tpu.memory_space<vmem>>) attributes {dimension_semantics = [#tpu.dimension_semantics<parallel>], iteration_bounds = array<i64: 2>, scalar_prefetch = 0 : i64, scratch_operands = 0 : i64, tpu.core_type = #tpu.core_type<tc>, window_params = [{transform_indices = @transform_0, window_bounds = array<i64: 1, 8, 64>}, {transform_indices = @transform_1, window_bounds = array<i64: 1, 12, 64>}, {pipeline_mode = #tpu.pipeline_mode<synchronous>, transform_indices = @transform_2, window_bounds = array<i64: 64, 64>}, {pipeline_mode = #tpu.pipeline_mode<synchronous>, transform_indices = @transform_3, window_bounds = array<i64: 1, 64>}, {pipeline_mode = #tpu.pipeline_mode<synchronous>, transform_indices = @transform_4, window_bounds = array<i64: 64, 128>}, {pipeline_mode = #tpu.pipeline_mode<synchronous>, transform_indices = @transform_5, window_bounds = array<i64: 1, 128>}, {pipeline_mode = #tpu.pipeline_mode<synchronous>, transform_indices = @transform_6, window_bounds = array<i64: 64, 64>}, {pipeline_mode = #tpu.pipeline_mode<synchronous>, transform_indices = @transform_7, window_bounds = array<i64: 1, 64>}, {pipeline_mode = #tpu.pipeline_mode<synchronous>, transform_indices = @transform_8, window_bounds = array<i64: 1, 64>}, {pipeline_mode = #tpu.pipeline_mode<synchronous>, transform_indices = @transform_9, window_bounds = array<i64: 1, 64>}, {transform_indices = @transform_10, window_bounds = array<i64: 1, 8, 64>}]} {
    %c0 = arith.constant 0 : index
    %c0_0 = arith.constant 0 : index
    %c0_1 = arith.constant 0 : index
    %0 = vector.load %arg1[%c0, %c0_0, %c0_1] : memref<1x8x64xf32, #tpu.memory_space<vmem>>, vector<1x8x64xf32>
    %1 = vector.shape_cast %0 : vector<1x8x64xf32> to vector<8x64xf32>
    %c0_2 = arith.constant 0 : index
    %c0_3 = arith.constant 0 : index
    %c0_4 = arith.constant 0 : index
    %2 = vector.load %arg2[%c0_2, %c0_3, %c0_4] : memref<1x12x64xf32, #tpu.memory_space<vmem>>, vector<1x12x64xf32>
    %3 = vector.shape_cast %2 : vector<1x12x64xf32> to vector<12x64xf32>
    %c0_5 = arith.constant 0 : index
    %c0_6 = arith.constant 0 : index
    %4 = vector.load %arg3[%c0_5, %c0_6] : memref<64x64xf32, #tpu.memory_space<vmem>>, vector<64x64xf32>
    %cst = arith.constant dense<0.000000e+00> : vector<8x64xf32>
    %5 = tpu.matmul %1, %4, %cst {dimension_numbers = #tpu.dot_dimension_numbers<[1], [0], [0], [1], [0, 0, 1, 1], [], []>} : vector<8x64xf32>, vector<64x64xf32>, vector<8x64xf32> -> vector<8x64xf32>
    %c0_7 = arith.constant 0 : index
    %c0_8 = arith.constant 0 : index
    %6 = vector.load %arg4[%c0_7, %c0_8] : memref<1x64xf32, #tpu.memory_space<vmem>>, vector<1x64xf32>
    %7 = vector.broadcast %6 : vector<1x64xf32> to vector<8x64xf32>
    %8 = arith.addf %5, %7 : vector<8x64xf32>
    %c0_9 = arith.constant 0 : index
    %c0_10 = arith.constant 0 : index
    %9 = vector.load %arg5[%c0_9, %c0_10] : memref<64x128xf32, #tpu.memory_space<vmem>>, vector<64x128xf32>
    %cst_11 = arith.constant dense<0.000000e+00> : vector<12x128xf32>
    %10 = tpu.matmul %3, %9, %cst_11 {dimension_numbers = #tpu.dot_dimension_numbers<[1], [0], [0], [1], [0, 0, 1, 1], [], []>} : vector<12x64xf32>, vector<64x128xf32>, vector<12x128xf32> -> vector<12x128xf32>
    %c0_12 = arith.constant 0 : index
    %c0_13 = arith.constant 0 : index
    %11 = vector.load %arg6[%c0_12, %c0_13] : memref<1x128xf32, #tpu.memory_space<vmem>>, vector<1x128xf32>
    %12 = vector.broadcast %11 : vector<1x128xf32> to vector<12x128xf32>
    %13 = arith.addf %10, %12 : vector<12x128xf32>
    %14 = vector.extract_strided_slice %13 {offsets = [0, 0], sizes = [12, 64], strides = [1, 1]} : vector<12x128xf32> to vector<12x64xf32>
    %15 = vector.extract_strided_slice %13 {offsets = [0, 64], sizes = [12, 64], strides = [1, 1]} : vector<12x128xf32> to vector<12x64xf32>
    %c0_14 = arith.constant 0 : index
    %c0_15 = arith.constant 0 : index
    %16 = vector.load %arg7[%c0_14, %c0_15] : memref<64x64xf32, #tpu.memory_space<vmem>>, vector<64x64xf32>
    %c0_16 = arith.constant 0 : index
    %c0_17 = arith.constant 0 : index
    %17 = vector.load %arg8[%c0_16, %c0_17] : memref<1x64xf32, #tpu.memory_space<vmem>>, vector<1x64xf32>
    %c0_18 = arith.constant 0 : index
    %c0_19 = arith.constant 0 : index
    %18 = vector.load %arg9[%c0_18, %c0_19] : memref<1x64xf32, #tpu.memory_space<vmem>>, vector<1x64xf32>
    %c0_20 = arith.constant 0 : index
    %c0_21 = arith.constant 0 : index
    %19 = vector.load %arg10[%c0_20, %c0_21] : memref<1x64xf32, #tpu.memory_space<vmem>>, vector<1x64xf32>
    %20 = vector.extract_strided_slice %8 {offsets = [0, 0], sizes = [8, 32], strides = [1, 1]} : vector<8x64xf32> to vector<8x32xf32>
    %21 = vector.extract_strided_slice %14 {offsets = [0, 0], sizes = [12, 32], strides = [1, 1]} : vector<12x64xf32> to vector<12x32xf32>
    %22 = vector.extract_strided_slice %15 {offsets = [0, 0], sizes = [12, 32], strides = [1, 1]} : vector<12x64xf32> to vector<12x32xf32>
    %cst_22 = arith.constant dense<0.000000e+00> : vector<8x12xf32>
    %23 = tpu.matmul %20, %21, %cst_22 {dimension_numbers = #tpu.dot_dimension_numbers<[1], [1], [0], [0], [0, 0, 1, 0], [], []>} : vector<8x32xf32>, vector<12x32xf32>, vector<8x12xf32> -> vector<8x12xf32>
    %cst_23 = arith.constant 0.176776692 : f32
    %24 = vector.broadcast %cst_23 : f32 to vector<8x12xf32>
    %25 = arith.mulf %23, %24 : vector<8x12xf32>
    %cst_24 = arith.constant dense<0xFF800000> : vector<8xf32>
    %26 = vector.multi_reduction <maximumf>, %25, %cst_24 [1] : vector<8x12xf32> to vector<8xf32>
    %27 = vector.shape_cast %26 : vector<8xf32> to vector<8x1xf32>
    %28 = vector.broadcast %27 : vector<8x1xf32> to vector<8x12xf32>
    %29 = arith.subf %25, %28 : vector<8x12xf32>
    %30 = math.exp %29 : vector<8x12xf32>
    %cst_25 = arith.constant dense<0.000000e+00> : vector<8xf32>
    %31 = vector.multi_reduction <add>, %30, %cst_25 [1] : vector<8x12xf32> to vector<8xf32>
    %32 = vector.shape_cast %31 : vector<8xf32> to vector<8x1xf32>
    %33 = tpu.reciprocal %32 {approx = true} : vector<8x1xf32> -> vector<8x1xf32>
    %34 = vector.broadcast %33 : vector<8x1xf32> to vector<8x12xf32>
    %35 = arith.mulf %30, %34 : vector<8x12xf32>
    %cst_26 = arith.constant dense<0.000000e+00> : vector<8x32xf32>
    %36 = tpu.matmul %35, %22, %cst_26 {dimension_numbers = #tpu.dot_dimension_numbers<[1], [0], [0], [1], [0, 0, 1, 1], [], []>} : vector<8x12xf32>, vector<12x32xf32>, vector<8x32xf32> -> vector<8x32xf32>
    %37 = vector.extract_strided_slice %8 {offsets = [0, 32], sizes = [8, 32], strides = [1, 1]} : vector<8x64xf32> to vector<8x32xf32>
    %38 = vector.extract_strided_slice %14 {offsets = [0, 32], sizes = [12, 32], strides = [1, 1]} : vector<12x64xf32> to vector<12x32xf32>
    %39 = vector.extract_strided_slice %15 {offsets = [0, 32], sizes = [12, 32], strides = [1, 1]} : vector<12x64xf32> to vector<12x32xf32>
    %cst_27 = arith.constant dense<0.000000e+00> : vector<8x12xf32>
    %40 = tpu.matmul %37, %38, %cst_27 {dimension_numbers = #tpu.dot_dimension_numbers<[1], [1], [0], [0], [0, 0, 1, 0], [], []>} : vector<8x32xf32>, vector<12x32xf32>, vector<8x12xf32> -> vector<8x12xf32>
    %cst_28 = arith.constant 0.176776692 : f32
    %41 = vector.broadcast %cst_28 : f32 to vector<8x12xf32>
    %42 = arith.mulf %40, %41 : vector<8x12xf32>
    %cst_29 = arith.constant dense<0xFF800000> : vector<8xf32>
    %43 = vector.multi_reduction <maximumf>, %42, %cst_29 [1] : vector<8x12xf32> to vector<8xf32>
    %44 = vector.shape_cast %43 : vector<8xf32> to vector<8x1xf32>
    %45 = vector.broadcast %44 : vector<8x1xf32> to vector<8x12xf32>
    %46 = arith.subf %42, %45 : vector<8x12xf32>
    %47 = math.exp %46 : vector<8x12xf32>
    %cst_30 = arith.constant dense<0.000000e+00> : vector<8xf32>
    %48 = vector.multi_reduction <add>, %47, %cst_30 [1] : vector<8x12xf32> to vector<8xf32>
    %49 = vector.shape_cast %48 : vector<8xf32> to vector<8x1xf32>
    %50 = tpu.reciprocal %49 {approx = true} : vector<8x1xf32> -> vector<8x1xf32>
    %51 = vector.broadcast %50 : vector<8x1xf32> to vector<8x12xf32>
    %52 = arith.mulf %47, %51 : vector<8x12xf32>
    %cst_31 = arith.constant dense<0.000000e+00> : vector<8x32xf32>
    %53 = tpu.matmul %52, %39, %cst_31 {dimension_numbers = #tpu.dot_dimension_numbers<[1], [0], [0], [1], [0, 0, 1, 1], [], []>} : vector<8x12xf32>, vector<12x32xf32>, vector<8x32xf32> -> vector<8x32xf32>
    %54 = tpu.concatenate %36, %53 in 1 : vector<8x32xf32>, vector<8x32xf32> -> vector<8x64xf32>
    %cst_32 = arith.constant dense<0.000000e+00> : vector<8x64xf32>
    %55 = tpu.matmul %54, %16, %cst_32 {dimension_numbers = #tpu.dot_dimension_numbers<[1], [0], [0], [1], [0, 0, 1, 1], [], []>} : vector<8x64xf32>, vector<64x64xf32>, vector<8x64xf32> -> vector<8x64xf32>
    %56 = vector.broadcast %17 : vector<1x64xf32> to vector<8x64xf32>
    %57 = arith.addf %55, %56 : vector<8x64xf32>
    %58 = arith.addf %57, %1 : vector<8x64xf32>
    %59 = vector.extract_strided_slice %58 {offsets = [0, 0], sizes = [8, 16], strides = [1, 1]} : vector<8x64xf32> to vector<8x16xf32>
    %60 = vector.extract_strided_slice %58 {offsets = [0, 16], sizes = [8, 16], strides = [1, 1]} : vector<8x64xf32> to vector<8x16xf32>
    %61 = vector.extract_strided_slice %58 {offsets = [0, 32], sizes = [8, 16], strides = [1, 1]} : vector<8x64xf32> to vector<8x16xf32>
    %62 = vector.extract_strided_slice %58 {offsets = [0, 48], sizes = [8, 16], strides = [1, 1]} : vector<8x64xf32> to vector<8x16xf32>
    %63 = arith.mulf %59, %59 : vector<8x16xf32>
    %64 = arith.mulf %60, %60 : vector<8x16xf32>
    %65 = arith.addf %63, %64 : vector<8x16xf32>
    %66 = arith.mulf %61, %61 : vector<8x16xf32>
    %67 = arith.addf %65, %66 : vector<8x16xf32>
    %68 = arith.mulf %62, %62 : vector<8x16xf32>
    %69 = arith.addf %67, %68 : vector<8x16xf32>
    %cst_33 = arith.constant 9.99999997E-7 : f32
    %70 = vector.broadcast %cst_33 : f32 to vector<8x16xf32>
    %71 = arith.addf %69, %70 : vector<8x16xf32>
    %72 = math.sqrt %71 : vector<8x16xf32>
    %cst_34 = arith.constant 9.99999997E-7 : f32
    %73 = vector.broadcast %cst_34 : f32 to vector<8x16xf32>
    %74 = arith.addf %72, %73 : vector<8x16xf32>
    %75 = tpu.reciprocal %74 {approx = true} : vector<8x16xf32> -> vector<8x16xf32>
    %76 = arith.mulf %59, %75 : vector<8x16xf32>
    %77 = arith.mulf %60, %75 : vector<8x16xf32>
    %78 = arith.mulf %61, %75 : vector<8x16xf32>
    %79 = arith.mulf %62, %75 : vector<8x16xf32>
    %80 = tpu.concatenate %76, %77, %78, %79 in 1 : vector<8x16xf32>, vector<8x16xf32>, vector<8x16xf32>, vector<8x16xf32> -> vector<8x64xf32>
    %81 = vector.broadcast %18 : vector<1x64xf32> to vector<8x64xf32>
    %82 = arith.mulf %81, %80 : vector<8x64xf32>
    %83 = vector.broadcast %19 : vector<1x64xf32> to vector<8x64xf32>
    %84 = arith.addf %82, %83 : vector<8x64xf32>
    %c0_35 = arith.constant 0 : index
    %c0_36 = arith.constant 0 : index
    %c0_37 = arith.constant 0 : index
    %85 = vector.load %arg11[%c0_35, %c0_36, %c0_37] : memref<1x8x64xf32, #tpu.memory_space<vmem>>, vector<1x8x64xf32>
    %86 = vector.shape_cast %85 : vector<1x8x64xf32> to vector<8x64xf32>
    %87 = vector.shape_cast %84 : vector<8x64xf32> to vector<1x8x64xf32>
    tpu.vector_store %arg11[%c0_35, %c0_36, %c0_37], %87 {strides = array<i32>} : memref<1x8x64xf32, #tpu.memory_space<vmem>>, vector<1x8x64xf32>,
    return
  }
  func.func @transform_0(%arg0: i32) -> (i32, i32, i32) {
    %c0_i32 = arith.constant 0 : i32
    %c0_i32_0 = arith.constant 0 : i32
    %c0_i32_1 = arith.constant 0 : i32
    return %arg0, %c0_i32, %c0_i32_0 : i32, i32, i32
  }
  func.func @transform_1(%arg0: i32) -> (i32, i32, i32) {
    %c0_i32 = arith.constant 0 : i32
    %c0_i32_0 = arith.constant 0 : i32
    %c0_i32_1 = arith.constant 0 : i32
    return %arg0, %c0_i32, %c0_i32_0 : i32, i32, i32
  }
  func.func @transform_2(%arg0: i32) -> (i32, i32) {
    %c0_i32 = arith.constant 0 : i32
    %c0_i32_0 = arith.constant 0 : i32
    %c0_i32_1 = arith.constant 0 : i32
    return %c0_i32, %c0_i32_0 : i32, i32
  }
  func.func @transform_3(%arg0: i32) -> (i32, i32) {
    %c0_i32 = arith.constant 0 : i32
    %c0_i32_0 = arith.constant 0 : i32
    %c0_i32_1 = arith.constant 0 : i32
    return %c0_i32, %c0_i32_0 : i32, i32
  }
  func.func @transform_4(%arg0: i32) -> (i32, i32) {
    %c0_i32 = arith.constant 0 : i32
    %c0_i32_0 = arith.constant 0 : i32
    %c0_i32_1 = arith.constant 0 : i32
    return %c0_i32, %c0_i32_0 : i32, i32
  }
  func.func @transform_5(%arg0: i32) -> (i32, i32) {
    %c0_i32 = arith.constant 0 : i32
    %c0_i32_0 = arith.constant 0 : i32
    %c0_i32_1 = arith.constant 0 : i32
    return %c0_i32, %c0_i32_0 : i32, i32
  }
  func.func @transform_6(%arg0: i32) -> (i32, i32) {
    %c0_i32 = arith.constant 0 : i32
    %c0_i32_0 = arith.constant 0 : i32
    %c0_i32_1 = arith.constant 0 : i32
    return %c0_i32, %c0_i32_0 : i32, i32
  }
  func.func @transform_7(%arg0: i32) -> (i32, i32) {
    %c0_i32 = arith.constant 0 : i32
    %c0_i32_0 = arith.constant 0 : i32
    %c0_i32_1 = arith.constant 0 : i32
    return %c0_i32, %c0_i32_0 : i32, i32
  }
  func.func @transform_8(%arg0: i32) -> (i32, i32) {
    %c0_i32 = arith.constant 0 : i32
    %c0_i32_0 = arith.constant 0 : i32
    %c0_i32_1 = arith.constant 0 : i32
    return %c0_i32, %c0_i32_0 : i32, i32
  }
  func.func @transform_9(%arg0: i32) -> (i32, i32) {
    %c0_i32 = arith.constant 0 : i32
    %c0_i32_0 = arith.constant 0 : i32
    %c0_i32_1 = arith.constant 0 : i32
    return %c0_i32, %c0_i32_0 : i32, i32
  }
  func.func @transform_10(%arg0: i32) -> (i32, i32, i32) {
    %c0_i32 = arith.constant 0 : i32
    %c0_i32_0 = arith.constant 0 : i32
    %c0_i32_1 = arith.constant 0 : i32
    return %arg0, %c0_i32, %c0_i32_0 : i32, i32, i32
  }
}

module attributes {stable_mosaic.version = 11 : i64} {
  func.func @kernel(%arg0: i32, %arg1: memref<16x64xf32, #tpu.memory_space<vmem>>, %arg2: memref<64x128xf32, #tpu.memory_space<vmem>>, %arg3: memref<1x128xf32, #tpu.memory_space<vmem>>, %arg4: memref<1x32xf32, #tpu.memory_space<vmem>>, %arg5: memref<128x64xf32, #tpu.memory_space<vmem>>, %arg6: memref<1x64xf32, #tpu.memory_space<vmem>>, %arg7: memref<1x64xf32, #tpu.memory_space<vmem>>, %arg8: memref<1x64xf32, #tpu.memory_space<vmem>>, %arg9: memref<16x64xf32, #tpu.memory_space<vmem>>) attributes {dimension_semantics = [#tpu.dimension_semantics<parallel>], iteration_bounds = array<i64: 1>, scalar_prefetch = 0 : i64, scratch_operands = 0 : i64, tpu.core_type = #tpu.core_type<tc>, window_params = [{transform_indices = @transform_0, window_bounds = array<i64: 16, 64>}, {pipeline_mode = #tpu.pipeline_mode<synchronous>, transform_indices = @transform_1, window_bounds = array<i64: 64, 128>}, {pipeline_mode = #tpu.pipeline_mode<synchronous>, transform_indices = @transform_2, window_bounds = array<i64: 1, 128>}, {pipeline_mode = #tpu.pipeline_mode<synchronous>, transform_indices = @transform_3, window_bounds = array<i64: 1, 32>}, {pipeline_mode = #tpu.pipeline_mode<synchronous>, transform_indices = @transform_4, window_bounds = array<i64: 128, 64>}, {pipeline_mode = #tpu.pipeline_mode<synchronous>, transform_indices = @transform_5, window_bounds = array<i64: 1, 64>}, {pipeline_mode = #tpu.pipeline_mode<synchronous>, transform_indices = @transform_6, window_bounds = array<i64: 1, 64>}, {pipeline_mode = #tpu.pipeline_mode<synchronous>, transform_indices = @transform_7, window_bounds = array<i64: 1, 64>}, {transform_indices = @transform_8, window_bounds = array<i64: 16, 64>}]} {
    %c0 = arith.constant 0 : index
    %c0_0 = arith.constant 0 : index
    %0 = vector.load %arg1[%c0, %c0_0] : memref<16x64xf32, #tpu.memory_space<vmem>>, vector<16x64xf32>
    %c0_1 = arith.constant 0 : index
    %c0_2 = arith.constant 0 : index
    %1 = vector.load %arg2[%c0_1, %c0_2] : memref<64x128xf32, #tpu.memory_space<vmem>>, vector<64x128xf32>
    %cst = arith.constant dense<0.000000e+00> : vector<16x128xf32>
    %2 = tpu.matmul %0, %1, %cst {dimension_numbers = #tpu.dot_dimension_numbers<[1], [0], [0], [1], [0, 0, 1, 1], [], []>} : vector<16x64xf32>, vector<64x128xf32>, vector<16x128xf32> -> vector<16x128xf32>
    %c0_3 = arith.constant 0 : index
    %c0_4 = arith.constant 0 : index
    %3 = vector.load %arg3[%c0_3, %c0_4] : memref<1x128xf32, #tpu.memory_space<vmem>>, vector<1x128xf32>
    %4 = vector.broadcast %3 : vector<1x128xf32> to vector<16x128xf32>
    %5 = arith.addf %2, %4 : vector<16x128xf32>
    %6 = vector.extract_strided_slice %5 {offsets = [0, 0], sizes = [16, 32], strides = [1, 1]} : vector<16x128xf32> to vector<16x32xf32>
    %7 = vector.extract_strided_slice %5 {offsets = [0, 32], sizes = [16, 32], strides = [1, 1]} : vector<16x128xf32> to vector<16x32xf32>
    %8 = vector.extract_strided_slice %5 {offsets = [0, 64], sizes = [16, 32], strides = [1, 1]} : vector<16x128xf32> to vector<16x32xf32>
    %9 = vector.extract_strided_slice %5 {offsets = [0, 96], sizes = [16, 32], strides = [1, 1]} : vector<16x128xf32> to vector<16x32xf32>
    %10 = arith.mulf %6, %6 : vector<16x32xf32>
    %11 = arith.mulf %7, %7 : vector<16x32xf32>
    %12 = arith.addf %10, %11 : vector<16x32xf32>
    %13 = arith.mulf %8, %8 : vector<16x32xf32>
    %14 = arith.addf %12, %13 : vector<16x32xf32>
    %15 = arith.mulf %9, %9 : vector<16x32xf32>
    %16 = arith.addf %14, %15 : vector<16x32xf32>
    %17 = math.sqrt %16 : vector<16x32xf32>
    %c0_5 = arith.constant 0 : index
    %c0_6 = arith.constant 0 : index
    %18 = vector.load %arg4[%c0_5, %c0_6] : memref<1x32xf32, #tpu.memory_space<vmem>>, vector<1x32xf32>
    %19 = vector.broadcast %18 : vector<1x32xf32> to vector<16x32xf32>
    %20 = arith.addf %17, %19 : vector<16x32xf32>
    %cst_7 = arith.constant 5.000000e-01 : f32
    %21 = vector.broadcast %cst_7 : f32 to vector<16x32xf32>
    %22 = arith.mulf %21, %20 : vector<16x32xf32>
    %cst_8 = arith.constant 0.707106769 : f32
    %23 = vector.broadcast %cst_8 : f32 to vector<16x32xf32>
    %24 = arith.mulf %20, %23 : vector<16x32xf32>
    %25 = math.erf %24 : vector<16x32xf32>
    %cst_9 = arith.constant 1.000000e+00 : f32
    %26 = vector.broadcast %cst_9 : f32 to vector<16x32xf32>
    %27 = arith.addf %26, %25 : vector<16x32xf32>
    %28 = arith.mulf %22, %27 : vector<16x32xf32>
    %cst_10 = arith.constant 9.99999997E-7 : f32
    %29 = vector.broadcast %cst_10 : f32 to vector<16x32xf32>
    %30 = arith.addf %17, %29 : vector<16x32xf32>
    %31 = tpu.reciprocal %30 {approx = true} : vector<16x32xf32> -> vector<16x32xf32>
    %32 = arith.mulf %28, %31 : vector<16x32xf32>
    %33 = arith.mulf %6, %32 : vector<16x32xf32>
    %34 = arith.mulf %7, %32 : vector<16x32xf32>
    %35 = arith.mulf %8, %32 : vector<16x32xf32>
    %36 = arith.mulf %9, %32 : vector<16x32xf32>
    %37 = tpu.concatenate %33, %34, %35, %36 in 1 : vector<16x32xf32>, vector<16x32xf32>, vector<16x32xf32>, vector<16x32xf32> -> vector<16x128xf32>
    %c0_11 = arith.constant 0 : index
    %c0_12 = arith.constant 0 : index
    %38 = vector.load %arg5[%c0_11, %c0_12] : memref<128x64xf32, #tpu.memory_space<vmem>>, vector<128x64xf32>
    %cst_13 = arith.constant dense<0.000000e+00> : vector<16x64xf32>
    %39 = tpu.matmul %37, %38, %cst_13 {dimension_numbers = #tpu.dot_dimension_numbers<[1], [0], [0], [1], [0, 0, 1, 1], [], []>} : vector<16x128xf32>, vector<128x64xf32>, vector<16x64xf32> -> vector<16x64xf32>
    %c0_14 = arith.constant 0 : index
    %c0_15 = arith.constant 0 : index
    %40 = vector.load %arg6[%c0_14, %c0_15] : memref<1x64xf32, #tpu.memory_space<vmem>>, vector<1x64xf32>
    %41 = vector.broadcast %40 : vector<1x64xf32> to vector<16x64xf32>
    %42 = arith.addf %39, %41 : vector<16x64xf32>
    %43 = arith.addf %42, %0 : vector<16x64xf32>
    %c0_16 = arith.constant 0 : index
    %c0_17 = arith.constant 0 : index
    %44 = vector.load %arg7[%c0_16, %c0_17] : memref<1x64xf32, #tpu.memory_space<vmem>>, vector<1x64xf32>
    %c0_18 = arith.constant 0 : index
    %c0_19 = arith.constant 0 : index
    %45 = vector.load %arg8[%c0_18, %c0_19] : memref<1x64xf32, #tpu.memory_space<vmem>>, vector<1x64xf32>
    %46 = vector.extract_strided_slice %43 {offsets = [0, 0], sizes = [16, 16], strides = [1, 1]} : vector<16x64xf32> to vector<16x16xf32>
    %47 = vector.extract_strided_slice %43 {offsets = [0, 16], sizes = [16, 16], strides = [1, 1]} : vector<16x64xf32> to vector<16x16xf32>
    %48 = vector.extract_strided_slice %43 {offsets = [0, 32], sizes = [16, 16], strides = [1, 1]} : vector<16x64xf32> to vector<16x16xf32>
    %49 = vector.extract_strided_slice %43 {offsets = [0, 48], sizes = [16, 16], strides = [1, 1]} : vector<16x64xf32> to vector<16x16xf32>
    %50 = arith.mulf %46, %46 : vector<16x16xf32>
    %51 = arith.mulf %47, %47 : vector<16x16xf32>
    %52 = arith.addf %50, %51 : vector<16x16xf32>
    %53 = arith.mulf %48, %48 : vector<16x16xf32>
    %54 = arith.addf %52, %53 : vector<16x16xf32>
    %55 = arith.mulf %49, %49 : vector<16x16xf32>
    %56 = arith.addf %54, %55 : vector<16x16xf32>
    %cst_20 = arith.constant 9.99999997E-7 : f32
    %57 = vector.broadcast %cst_20 : f32 to vector<16x16xf32>
    %58 = arith.addf %56, %57 : vector<16x16xf32>
    %59 = math.sqrt %58 : vector<16x16xf32>
    %cst_21 = arith.constant 9.99999997E-7 : f32
    %60 = vector.broadcast %cst_21 : f32 to vector<16x16xf32>
    %61 = arith.addf %59, %60 : vector<16x16xf32>
    %62 = tpu.reciprocal %61 {approx = true} : vector<16x16xf32> -> vector<16x16xf32>
    %63 = arith.mulf %46, %62 : vector<16x16xf32>
    %64 = arith.mulf %47, %62 : vector<16x16xf32>
    %65 = arith.mulf %48, %62 : vector<16x16xf32>
    %66 = arith.mulf %49, %62 : vector<16x16xf32>
    %67 = tpu.concatenate %63, %64, %65, %66 in 1 : vector<16x16xf32>, vector<16x16xf32>, vector<16x16xf32>, vector<16x16xf32> -> vector<16x64xf32>
    %68 = vector.broadcast %44 : vector<1x64xf32> to vector<16x64xf32>
    %69 = arith.mulf %68, %67 : vector<16x64xf32>
    %70 = vector.broadcast %45 : vector<1x64xf32> to vector<16x64xf32>
    %71 = arith.addf %69, %70 : vector<16x64xf32>
    %c0_22 = arith.constant 0 : index
    %c0_23 = arith.constant 0 : index
    %72 = vector.load %arg9[%c0_22, %c0_23] : memref<16x64xf32, #tpu.memory_space<vmem>>, vector<16x64xf32>
    tpu.vector_store %arg9[%c0_22, %c0_23], %71 {strides = array<i32>} : memref<16x64xf32, #tpu.memory_space<vmem>>, vector<16x64xf32>,
    return
  }
  func.func @transform_0(%arg0: i32) -> (i32, i32) {
    %c0_i32 = arith.constant 0 : i32
    %c0_i32_0 = arith.constant 0 : i32
    return %arg0, %c0_i32 : i32, i32
  }
  func.func @transform_1(%arg0: i32) -> (i32, i32) {
    %c0_i32 = arith.constant 0 : i32
    %c0_i32_0 = arith.constant 0 : i32
    %c0_i32_1 = arith.constant 0 : i32
    return %c0_i32, %c0_i32_0 : i32, i32
  }
  func.func @transform_2(%arg0: i32) -> (i32, i32) {
    %c0_i32 = arith.constant 0 : i32
    %c0_i32_0 = arith.constant 0 : i32
    %c0_i32_1 = arith.constant 0 : i32
    return %c0_i32, %c0_i32_0 : i32, i32
  }
  func.func @transform_3(%arg0: i32) -> (i32, i32) {
    %c0_i32 = arith.constant 0 : i32
    %c0_i32_0 = arith.constant 0 : i32
    %c0_i32_1 = arith.constant 0 : i32
    return %c0_i32, %c0_i32_0 : i32, i32
  }
  func.func @transform_4(%arg0: i32) -> (i32, i32) {
    %c0_i32 = arith.constant 0 : i32
    %c0_i32_0 = arith.constant 0 : i32
    %c0_i32_1 = arith.constant 0 : i32
    return %c0_i32, %c0_i32_0 : i32, i32
  }
  func.func @transform_5(%arg0: i32) -> (i32, i32) {
    %c0_i32 = arith.constant 0 : i32
    %c0_i32_0 = arith.constant 0 : i32
    %c0_i32_1 = arith.constant 0 : i32
    return %c0_i32, %c0_i32_0 : i32, i32
  }
  func.func @transform_6(%arg0: i32) -> (i32, i32) {
    %c0_i32 = arith.constant 0 : i32
    %c0_i32_0 = arith.constant 0 : i32
    %c0_i32_1 = arith.constant 0 : i32
    return %c0_i32, %c0_i32_0 : i32, i32
  }
  func.func @transform_7(%arg0: i32) -> (i32, i32) {
    %c0_i32 = arith.constant 0 : i32
    %c0_i32_0 = arith.constant 0 : i32
    %c0_i32_1 = arith.constant 0 : i32
    return %c0_i32, %c0_i32_0 : i32, i32
  }
  func.func @transform_8(%arg0: i32) -> (i32, i32) {
    %c0_i32 = arith.constant 0 : i32
    %c0_i32_0 = arith.constant 0 : i32
    return %arg0, %c0_i32 : i32, i32
  }
}

</mosaic_0001>

<llo_original>
// kernel: quaternion_decoder_layer.5
$region0: #{quaternion_decoder_layer.5}
  #allocation0 [shape = 'u32[]', space=smem, size = 0x4, offset = 0x4, fixed_abs, tag = 'smem constant byte address 0x4 - core index']
  #allocation1 [shape = 'u32[72,128]{1,0:T(1,128)}', space=vmem, size = 0x9000, scoped, tag = 'internal scratch']
  %s0 = inlined_call_operand.vmem [shape: f32[16,64], index: 0, kind: input, shape index: {}]
  %s1 = inlined_call_operand.vmem [shape: f32[64,128], index: 1, kind: input, shape index: {}]
  %s2 = inlined_call_operand.vmem [shape: f32[1,128], index: 2, kind: input, shape index: {}]
  %s3 = inlined_call_operand.vmem [shape: f32[1,32], index: 3, kind: input, shape index: {}]
  %s4 = inlined_call_operand.vmem [shape: f32[128,64], index: 4, kind: input, shape index: {}]
  %s5 = inlined_call_operand.vmem [shape: f32[1,64], index: 5, kind: input, shape index: {}]
  %s6 = inlined_call_operand.vmem [shape: f32[1,64], index: 6, kind: input, shape index: {}]
  %s7 = inlined_call_operand.vmem [shape: f32[1,64], index: 7, kind: input, shape index: {}]
  %s8 = inlined_call_operand.vmem [shape: f32[16,64], index: 8, kind: output, shape index: {}]
  %s9 = sld [smem:[#allocation0]]
  $region42: #{quaternion_decoder_layer.5} parent=0
    _
  %s11 = ssub.s32 1, %s9
  %s12 = scalar_select 0, %s11, %s9
  // Predicated region
  $region2: #{quaternion_decoder_layer.5} parent=0 // pred_check
    _
  $region3: #{quaternion_decoder_layer.5} parent=0 // pred_check_branch
    %14 = sbr.rel (0) target = $region5
  $region4: #{quaternion_decoder_layer.5} parent=0 // pred_region
    _
  $region5: #{quaternion_decoder_layer.5} parent=0 // pred_fallthru
    _
  // Predicated region
  $region6: #{quaternion_decoder_layer.5} parent=0 // pred_check
    _
  $region7: #{quaternion_decoder_layer.5} parent=0 // pred_check_branch
    %16 = sbr.rel (0) target = $region9
  $region8: #{quaternion_decoder_layer.5} parent=0 // pred_region
    _
  $region9: #{quaternion_decoder_layer.5} parent=0 // pred_fallthru
    _
  // Predicated region
  $region10: #{quaternion_decoder_layer.5} parent=0 // pred_check
    _
  $region11: #{quaternion_decoder_layer.5} parent=0 // pred_check_branch
    %18 = sbr.rel (0) target = $region13
  $region12: #{quaternion_decoder_layer.5} parent=0 // pred_region
    _
  $region13: #{quaternion_decoder_layer.5} parent=0 // pred_fallthru
    _
  // Predicated region
  $region14: #{quaternion_decoder_layer.5} parent=0 // pred_check
    _
  $region15: #{quaternion_decoder_layer.5} parent=0 // pred_check_branch
    %20 = sbr.rel (0) target = $region17
  $region16: #{quaternion_decoder_layer.5} parent=0 // pred_region
    _
  $region17: #{quaternion_decoder_layer.5} parent=0 // pred_fallthru
    _
  // Predicated region
  $region18: #{quaternion_decoder_layer.5} parent=0 // pred_check
    _
  $region19: #{quaternion_decoder_layer.5} parent=0 // pred_check_branch
    %22 = sbr.rel (0) target = $region21
  $region20: #{quaternion_decoder_layer.5} parent=0 // pred_region
    _
  $region21: #{quaternion_decoder_layer.5} parent=0 // pred_fallthru
    _
  // Predicated region
  $region22: #{quaternion_decoder_layer.5} parent=0 // pred_check
    _
  $region23: #{quaternion_decoder_layer.5} parent=0 // pred_check_branch
    %24 = sbr.rel (0) target = $region25
  $region24: #{quaternion_decoder_layer.5} parent=0 // pred_region
    _
  $region25: #{quaternion_decoder_layer.5} parent=0 // pred_fallthru
    _
  // Predicated region
  $region26: #{quaternion_decoder_layer.5} parent=0 // pred_check
    _
  $region27: #{quaternion_decoder_layer.5} parent=0 // pred_check_branch
    %26 = sbr.rel (0) target = $region29
  $region28: #{quaternion_decoder_layer.5} parent=0 // pred_region
    _
  $region29: #{quaternion_decoder_layer.5} parent=0 // pred_fallthru
    _
  // Predicated region
  $region30: #{quaternion_decoder_layer.5} parent=0 // pred_check
    _
  $region31: #{quaternion_decoder_layer.5} parent=0 // pred_check_branch
    %28 = sbr.rel (0) target = $region33
  $region32: #{quaternion_decoder_layer.5} parent=0 // pred_region
    _
  $region33: #{quaternion_decoder_layer.5} parent=0 // pred_fallthru
    _
  %v29 = vld [vmem:[%s0] sm:$0xff]
  %v30 = vld [vmem:[%s0 + $0x8] sm:$0xff]
  %v31 = vld [vmem:[%s1] sm:$0xff]
  %v32 = vld [vmem:[%s1 + $0x8] sm:$0xff]
  %v33 = vld [vmem:[%s1 + $0x10] sm:$0xff]
  %v34 = vld [vmem:[%s1 + $0x18] sm:$0xff]
  %v35 = vld [vmem:[%s1 + $0x20] sm:$0xff]
  %v36 = vld [vmem:[%s1 + $0x28] sm:$0xff]
  %v37 = vld [vmem:[%s1 + $0x30] sm:$0xff]
  %v38 = vld [vmem:[%s1 + $0x38] sm:$0xff]
  %v39 = vld [vmem:[%s2] sm:$0x1]
  %v41 = vperm.slane %v39, 0
  %vm43 = vcmask 523264
  %v45 = vsel %vm43, %v29, 0
  %v48 = vsel %vm43, %v30, 0
  %50 = vmatpush.msra.mxu0 0.0
  %51 = vmatpush.msra.mxu0 0.0
  %52 = vmatpush.msra.mxu0 0.0
  %53 = vmatpush.msra.mxu0 0.0
  %54 = vmatpush.msra.mxu0 0.0
  %55 = vmatpush.msra.mxu0 0.0
  %56 = vmatpush.msra.mxu0 0.0
  %57 = vmatpush.msra.mxu0 0.0
  %58 = vmatpush.msra.mxu0 %v38
  %59 = vmatpush.msra.mxu0 %v37
  %60 = vmatpush.msra.mxu0 %v36
  %61 = vmatpush.msra.mxu0 %v35
  %62 = vmatpush.msra.mxu0 %v34
  %63 = vmatpush.msra.mxu0 %v33
  %64 = vmatpush.msra.mxu0 %v32
  %65 = vmatpush.msra.mxu0 %v31
  %66 = vmatmul.f32.gmra.mxu0 %v45
  %v67 = vpop.f32.mrf.mxu0
  %v68 = vadd.f32 %v41, %v67
  %69 = vmatmul.f32.gmra.mxu0 %v48
  %v70 = vpop.f32.mrf.mxu0
  %v71 = vadd.f32 %v41, %v70
  %72 = vdwg.mxu0
  %v73 = vmul.f32 %v68, %v68
  %v74 = vmul.f32 %v71, %v71
  %77 = vrot.lane.b32.xlu0 %v73, 96
  %v78 = vpop.permute.xlu0 %77
  %79 = vrot.lane.b32.xlu0 %v74, 96
  %v80 = vpop.permute.xlu0 %79
  %v83 = vadd.f32 %v73, %v78
  %v84 = vadd.f32 %v74, %v80
  %85 = vrot.lane.b32.xlu0 %v73, 64
  %v86 = vpop.permute.xlu0 %85
  %87 = vrot.lane.b32.xlu0 %v74, 64
  %v88 = vpop.permute.xlu0 %87
  %v91 = vadd.f32 %v83, %v86
  %v92 = vadd.f32 %v84, %v88
  %93 = vrot.lane.b32.xlu0 %v73, 32
  %v94 = vpop.permute.xlu0 %93
  %95 = vrot.lane.b32.xlu0 %v74, 32
  %v96 = vpop.permute.xlu0 %95
  %v99 = vadd.f32 %v91, %v94
  %v100 = vadd.f32 %v92, %v96
  %v101 = vrsqrt.pop %v99
  %v102 = vmul.f32 %v101, %v99
  %v103 = vmul.f32 %v102, %v101
  %v104 = vmul.f32 0.5, %v103
  %v105 = vsub.f32 1.5, %v104
  %v106 = vmul.f32 %v101, %v105
  %v107 = vmul.f32 %v99, %v106
  %vm108 = vcmp.eq.f32.partialorder %v99, inf
  %v109 = vsel %vm108, %v99, %v107
  %vm110 = vcmp.eq.f32.partialorder %v99, 0.0
  %v111 = vand.u32 %v99, 2147483648
  %v112 = vsel %vm110, %v111, %v109
  %v113 = vrsqrt.pop %v100
  %v114 = vmul.f32 %v113, %v100
  %v115 = vmul.f32 %v114, %v113
  %v116 = vmul.f32 0.5, %v115
  %v117 = vsub.f32 1.5, %v116
  %v118 = vmul.f32 %v113, %v117
  %v119 = vmul.f32 %v100, %v118
  %vm120 = vcmp.eq.f32.partialorder %v100, inf
  %v121 = vsel %vm120, %v100, %v119
  %vm122 = vcmp.eq.f32.partialorder %v100, 0.0
  %v123 = vand.u32 %v100, 2147483648
  %v124 = vsel %vm122, %v123, %v121
  %v125 = vld [vmem:[%s3] sm:$0x1]
  %v127 = vperm.slane %v125, 0
  %v129 = vadd.f32 %v112, %v127
  %v130 = vadd.f32 %v124, %v127
  %v131 = vmul.f32 %v129, 0.5
  %v132 = vmul.f32 %v130, 0.5
  %v133 = vmul.f32 %v129, 0.70710677
  %v134 = vmul.f32 %v130, 0.70710677
  %v135 = vmul.f32 %v133, %v133
  %v136 = vmin.f32 16.0, %v135
  %v137 = vmul.f32 %v136, 2.1237322e-06
  %v138 = vadd.f32 %v137, 0.00028619796
  %v139 = vmul.f32 %v136, %v138
  %v140 = vadd.f32 %v139, 0.0036580483
  %v141 = vmul.f32 %v136, %v140
  %v142 = vadd.f32 %v141, 0.05243302
  %v143 = vmul.f32 %v136, %v142
  %v144 = vadd.f32 %v143, 0.18741608
  %v145 = vmul.f32 %v136, %v144
  %v146 = vadd.f32 %v145, 1.1283791
  %v147 = vmul.f32 %v133, %v146
  %v148 = vmul.f32 %v136, 3.8918573e-05
  %v149 = vadd.f32 %v148, 0.001143296
  %v150 = vmul.f32 %v136, %v149
  %v151 = vadd.f32 %v150, 0.014752088
  %v152 = vmul.f32 %v136, %v151
  %v153 = vadd.f32 %v152, 0.112945676
  %v154 = vmul.f32 %v136, %v153
  %v155 = vadd.f32 %v154, 0.4994258
  %v156 = vmul.f32 %v136, %v155
  %v157 = vadd.f32 %v156, 1.0
  %v158 = vrcp.pop %v157
  %v159 = vmul.f32 %v157, %v158
  %v160 = vsub.f32 1.0, %v159
  %v161 = vmul.f32 %v158, %v160
  %v162 = vadd.f32 %v158, %v161
  %vm163 = vweird.f32 %v157
  %vm164 = vweird.f32 %v158
  %vm165 = vmor %vm163, %vm164
  %v166 = vsel %vm165, %v158, %v162
  %v167 = vand.u32 2147483647, %v157
  %vm168 = vcmp.eq.f32.partialorder %v167, 8.507059e+37
  %v169 = vand.u32 %v157, 2147483648
  %v170 = vor.u32 1.1754944e-38, %v169
  %v171 = vsel %vm168, %v170, %v166
  %v172 = vmul.f32 %v147, %v171
  %v173 = vmin.f32 %v172, 1.0
  %v174 = vmax.f32 %v173, -1.0
  %v175 = vmul.f32 %v134, %v134
  %v176 = vmin.f32 16.0, %v175
  %v177 = vmul.f32 %v176, 2.1237322e-06
  %v178 = vadd.f32 %v177, 0.00028619796
  %v179 = vmul.f32 %v176, %v178
  %v180 = vadd.f32 %v179, 0.0036580483
  %v181 = vmul.f32 %v176, %v180
  %v182 = vadd.f32 %v181, 0.05243302
  %v183 = vmul.f32 %v176, %v182
  %v184 = vadd.f32 %v183, 0.18741608
  %v185 = vmul.f32 %v176, %v184
  %v186 = vadd.f32 %v185, 1.1283791
  %v187 = vmul.f32 %v134, %v186
  %v188 = vmul.f32 %v176, 3.8918573e-05
  %v189 = vadd.f32 %v188, 0.001143296
  %v190 = vmul.f32 %v176, %v189
  %v191 = vadd.f32 %v190, 0.014752088
  %v192 = vmul.f32 %v176, %v191
  %v193 = vadd.f32 %v192, 0.112945676
  %v194 = vmul.f32 %v176, %v193
  %v195 = vadd.f32 %v194, 0.4994258
  %v196 = vmul.f32 %v176, %v195
  %v197 = vadd.f32 %v196, 1.0
  %v198 = vrcp.pop %v197
  %v199 = vmul.f32 %v197, %v198
  %v200 = vsub.f32 1.0, %v199
  %v201 = vmul.f32 %v198, %v200
  %v202 = vadd.f32 %v198, %v201
  %vm203 = vweird.f32 %v197
  %vm204 = vweird.f32 %v198
  %vm205 = vmor %vm203, %vm204
  %v206 = vsel %vm205, %v198, %v202
  %v207 = vand.u32 2147483647, %v197
  %vm208 = vcmp.eq.f32.partialorder %v207, 8.507059e+37
  %v209 = vand.u32 %v197, 2147483648
  %v210 = vor.u32 1.1754944e-38, %v209
  %v211 = vsel %vm208, %v210, %v206
  %v212 = vmul.f32 %v187, %v211
  %v213 = vmin.f32 %v212, 1.0
  %v214 = vmax.f32 %v213, -1.0
  %v215 = vadd.f32 %v174, 1.0
  %v216 = vadd.f32 %v214, 1.0
  %v217 = vmul.f32 %v131, %v215
  %v218 = vmul.f32 %v132, %v216
  %v219 = vadd.f32 %v112, 1e-06
  %v220 = vadd.f32 %v124, 1e-06
  %v221 = vrcp.pop %v219
  %v222 = vrcp.pop %v220
  %v223 = vmul.f32 %v217, %v221
  %v224 = vmul.f32 %v218, %v222
  %v225 = vmul.f32 %v68, %v223
  %v226 = vmul.f32 %v71, %v224
  %229 = vrot.lane.b32.xlu0 %v223, 32
  %v230 = vpop.permute.xlu0 %229
  %231 = vrot.lane.b32.xlu0 %v224, 32
  %v232 = vpop.permute.xlu0 %231
  %v235 = vmul.f32 %v68, %v230
  %v236 = vmul.f32 %v71, %v232
  %237 = vrot.lane.b32.xlu0 %v223, 64
  %v238 = vpop.permute.xlu0 %237
  %239 = vrot.lane.b32.xlu0 %v224, 64
  %v240 = vpop.permute.xlu0 %239
  %v243 = vmul.f32 %v68, %v238
  %v244 = vmul.f32 %v71, %v240
  %245 = vrot.lane.b32.xlu0 %v223, 96
  %v246 = vpop.permute.xlu0 %245
  %247 = vrot.lane.b32.xlu0 %v224, 96
  %v248 = vpop.permute.xlu0 %247
  %v251 = vmul.f32 %v68, %v246
  %v252 = vmul.f32 %v71, %v248
  %vm253 = vcmask 261120
  %v254 = vsel %vm253, %v225, %v235
  %v255 = vsel %vm253, %v226, %v236
  %v256 = vsel %vm43, %v254, %v243
  %v257 = vsel %vm43, %v255, %v244
  %vm258 = vcmask 785408
  %v259 = vsel %vm258, %v256, %v251
  %v260 = vsel %vm258, %v257, %v252
  %v261 = vld [vmem:[%s4] sm:$0xff]
  %v262 = vld [vmem:[%s4 + $0x8] sm:$0xff]
  %v263 = vld [vmem:[%s4 + $0x10] sm:$0xff]
  %v264 = vld [vmem:[%s4 + $0x18] sm:$0xff]
  %v265 = vld [vmem:[%s4 + $0x20] sm:$0xff]
  %v266 = vld [vmem:[%s4 + $0x28] sm:$0xff]
  %v267 = vld [vmem:[%s4 + $0x30] sm:$0xff]
  %v268 = vld [vmem:[%s4 + $0x38] sm:$0xff]
  %v269 = vld [vmem:[%s4 + $0x40] sm:$0xff]
  %v270 = vld [vmem:[%s4 + $0x48] sm:$0xff]
  %v271 = vld [vmem:[%s4 + $0x50] sm:$0xff]
  %v272 = vld [vmem:[%s4 + $0x58] sm:$0xff]
  %v273 = vld [vmem:[%s4 + $0x60] sm:$0xff]
  %v274 = vld [vmem:[%s4 + $0x68] sm:$0xff]
  %v275 = vld [vmem:[%s4 + $0x70] sm:$0xff]
  %v276 = vld [vmem:[%s4 + $0x78] sm:$0xff]
  %v277 = vld [vmem:[%s5] sm:$0x1]
  %v279 = vperm.slane %v277, 0
  %281 = vmatpush.msra.mxu0 %v276
  %282 = vmatpush.msra.mxu0 %v275
  %283 = vmatpush.msra.mxu0 %v274
  %284 = vmatpush.msra.mxu0 %v273
  %285 = vmatpush.msra.mxu0 %v272
  %286 = vmatpush.msra.mxu0 %v271
  %287 = vmatpush.msra.mxu0 %v270
  %288 = vmatpush.msra.mxu0 %v269
  %289 = vmatpush.msra.mxu0 %v268
  %290 = vmatpush.msra.mxu0 %v267
  %291 = vmatpush.msra.mxu0 %v266
  %292 = vmatpush.msra.mxu0 %v265
  %293 = vmatpush.msra.mxu0 %v264
  %294 = vmatpush.msra.mxu0 %v263
  %295 = vmatpush.msra.mxu0 %v262
  %296 = vmatpush.msra.mxu0 %v261
  %297 = vmatmul.f32.gmra.mxu0 %v259
  %v298 = vpop.f32.mrf.mxu0
  %v299 = vadd.f32 %v279, %v298
  %300 = vmatmul.f32.gmra.mxu0 %v260
  %v301 = vpop.f32.mrf.mxu0
  %v302 = vadd.f32 %v279, %v301
  %303 = vdwg.mxu0
  %v304 = vadd.f32 %v299, %v29
  %v305 = vadd.f32 %v302, %v30
  %v306 = vld [vmem:[%s6] sm:$0x1]
  %v307 = vld [vmem:[%s7] sm:$0x1]
  %v308 = vmul.f32 %v304, %v304
  %v309 = vmul.f32 %v305, %v305
  %312 = vrot.lane.b32.xlu0 %v308, 112
  %v313 = vpop.permute.xlu0 %312
  %314 = vrot.lane.b32.xlu0 %v309, 112
  %v315 = vpop.permute.xlu0 %314
  %v318 = vadd.f32 %v308, %v313
  %v319 = vadd.f32 %v309, %v315
  %320 = vrot.lane.b32.xlu0 %v308, 96
  %v321 = vpop.permute.xlu0 %320
  %322 = vrot.lane.b32.xlu0 %v309, 96
  %v323 = vpop.permute.xlu0 %322
  %v326 = vadd.f32 %v318, %v321
  %v327 = vadd.f32 %v319, %v323
  %328 = vrot.lane.b32.xlu0 %v308, 80
  %v329 = vpop.permute.xlu0 %328
  %330 = vrot.lane.b32.xlu0 %v309, 80
  %v331 = vpop.permute.xlu0 %330
  %v334 = vadd.f32 %v326, %v329
  %v335 = vadd.f32 %v327, %v331
  %v336 = vadd.f32 %v334, 1e-06
  %v337 = vadd.f32 %v335, 1e-06
  %v338 = vrsqrt.pop %v336
  %v339 = vmul.f32 %v338, %v336
  %v340 = vmul.f32 %v339, %v338
  %v341 = vmul.f32 0.5, %v340
  %v342 = vsub.f32 1.5, %v341
  %v343 = vmul.f32 %v338, %v342
  %v344 = vmul.f32 %v336, %v343
  %vm345 = vcmp.eq.f32.partialorder %v336, inf
  %v346 = vsel %vm345, %v336, %v344
  %vm347 = vcmp.eq.f32.partialorder %v336, 0.0
  %v348 = vand.u32 %v336, 2147483648
  %v349 = vsel %vm347, %v348, %v346
  %v350 = vrsqrt.pop %v337
  %v351 = vmul.f32 %v350, %v337
  %v352 = vmul.f32 %v351, %v350
  %v353 = vmul.f32 0.5, %v352
  %v354 = vsub.f32 1.5, %v353
  %v355 = vmul.f32 %v350, %v354
  %v356 = vmul.f32 %v337, %v355
  %vm357 = vcmp.eq.f32.partialorder %v337, inf
  %v358 = vsel %vm357, %v337, %v356
  %vm359 = vcmp.eq.f32.partialorder %v337, 0.0
  %v360 = vand.u32 %v337, 2147483648
  %v361 = vsel %vm359, %v360, %v358
  %v362 = vadd.f32 %v349, 1e-06
  %v363 = vadd.f32 %v361, 1e-06
  %v364 = vrcp.pop %v362
  %v365 = vrcp.pop %v363
  %v366 = vmul.f32 %v304, %v364
  %v367 = vmul.f32 %v305, %v365
  %370 = vrot.lane.b32.xlu0 %v364, 16
  %v371 = vpop.permute.xlu0 %370
  %372 = vrot.lane.b32.xlu0 %v365, 16
  %v373 = vpop.permute.xlu0 %372
  %v376 = vmul.f32 %v304, %v371
  %v377 = vmul.f32 %v305, %v373
  %378 = vrot.lane.b32.xlu0 %v364, 32
  %v379 = vpop.permute.xlu0 %378
  %380 = vrot.lane.b32.xlu0 %v365, 32
  %v381 = vpop.permute.xlu0 %380
  %v384 = vmul.f32 %v304, %v379
  %v385 = vmul.f32 %v305, %v381
  %386 = vrot.lane.b32.xlu0 %v364, 48
  %v387 = vpop.permute.xlu0 %386
  %388 = vrot.lane.b32.xlu0 %v365, 48
  %v389 = vpop.permute.xlu0 %388
  %v392 = vmul.f32 %v304, %v387
  %v393 = vmul.f32 %v305, %v389
  %vm394 = vcmask 130048
  %v395 = vsel %vm394, %v366, %v376
  %v396 = vsel %vm394, %v367, %v377
  %v397 = vsel %vm253, %v395, %v384
  %v398 = vsel %vm253, %v396, %v385
  %vm399 = vcmask 392192
  %v400 = vsel %vm399, %v397, %v392
  %v401 = vsel %vm399, %v398, %v393
  %v403 = vperm.slane %v306, 0
  %v405 = vmul.f32 %v403, %v400
  %v406 = vmul.f32 %v403, %v401
  %v408 = vperm.slane %v307, 0
  %v410 = vadd.f32 %v405, %v408
  %v411 = vadd.f32 %v406, %v408
  %412 = vst.msk [vmem:[%s8] sm:$0xff] %vm43, %v410
  %413 = vst.msk [vmem:[%s8 + $0x8] sm:$0xff] %vm43, %v411
  // Predicated region
  $region34: #{quaternion_decoder_layer.5} parent=0 // pred_check
    _
  $region35: #{quaternion_decoder_layer.5} parent=0 // pred_check_branch
    %415 = sbr.rel (0) target = $region37
  $region36: #{quaternion_decoder_layer.5} parent=0 // pred_region
    _
  $region37: #{quaternion_decoder_layer.5} parent=0 // pred_fallthru
    _
  // Predicated region
  $region38: #{quaternion_decoder_layer.5} parent=0 // pred_check
    _
  $region39: #{quaternion_decoder_layer.5} parent=0 // pred_check_branch
    %417 = sbr.rel (0) target = $region41
  $region40: #{quaternion_decoder_layer.5} parent=0 // pred_region
    _
  $region41: #{quaternion_decoder_layer.5} parent=0 // pred_fallthru
    _

// kernel: quaternion_decoder_layer.3
$region0: #{quaternion_decoder_layer.3}
  #allocation0 [shape = 'u32[]', space=smem, size = 0x4, offset = 0x4, fixed_abs, tag = 'smem constant byte address 0x4 - core index']
  #allocation1 [shape = 'u32[72,128]{1,0:T(1,128)}', space=vmem, size = 0x9000, scoped, tag = 'internal scratch']
  %s0 = inlined_call_operand.vmem [shape: f32[2,8,64], index: 0, kind: input, shape index: {}]
  %s1 = inlined_call_operand.hbm [shape: f32[64,192], index: 1, kind: input, shape index: {}]
  %s2 = inlined_call_operand.vmem [shape: f32[1,192], index: 2, kind: input, shape index: {}]
  %s3 = inlined_call_operand.vmem [shape: f32[64,64], index: 3, kind: input, shape index: {}]
  %s4 = inlined_call_operand.vmem [shape: f32[1,64], index: 4, kind: input, shape index: {}]
  %s5 = inlined_call_operand.vmem [shape: f32[1,64], index: 5, kind: input, shape index: {}]
  %s6 = inlined_call_operand.vmem [shape: f32[1,64], index: 6, kind: input, shape index: {}]
  %s7 = inlined_call_operand.vmem [shape: f32[2,8,64], index: 7, kind: output, shape index: {}]
  %s8 = sld [smem:[#allocation0]]
  $region65: #{quaternion_decoder_layer.3} parent=0
    _
  %s10 = ssub.s32 1, %s8
  %s11 = scalar_select 0, %s10, %s8
  $region1: #{quaternion_decoder_layer.3} parent=0
    #allocation2 [shape = 'u8[65536]{0}', space=vmem, size = 0x10000, scoped, tag = 'input window, operand 1, single buffered']
    #allocation3 [shape = 's32[2]{0}', space=sflag, size = 0x8, scoped, tag = 'scoped memory for quaternion_decoder_layer.3']
    %12 = vsyncpa [#allocation3], 0
    loop: start=0, step=1, limit=4
    $region2: #{quaternion_decoder_layer.3} parent=1 // loop_pre_header
      _
    $region3: #{quaternion_decoder_layer.3} parent=1 // loop_header
      %s14 = sphi 0, %s18
      %p15 = scmp.ge.s32.totalorder %s14, 4
      %s24 = sphi 0, %s26
      %s27 = sphi 0, %s24
      %s28 = sphi 0, %s27
      %s44 = sphi 0, %s28
      %s48 = sphi 0, %s48
      %s50 = sphi 0, %s48
      %s51 = sphi 0, %s50
      %s65 = sphi 0, %s51
      %s69 = sphi 0, %s69
      %s71 = sphi 0, %s69
      %s72 = sphi 0, %s71
      %s86 = sphi 0, %s72
      %s90 = sphi 0, %s90
      %s92 = sphi 0, %s90
      %s93 = sphi 0, %s92
      %s107 = sphi 0, %s93
      %s111 = sphi 0, %s111
      %s113 = sphi 0, %s111
      %s114 = sphi 0, %s113
      %s128 = sphi 0, %s114
      %s132 = sphi 0, %s132
      %s134 = sphi 0, %s132
      %s135 = sphi 0, %s134
      %s149 = sphi 0, %s135
      %s153 = sphi 0, %s153
      %s155 = sphi 0, %s153
      %s156 = sphi 0, %s155
      %s170 = sphi 0, %s156
      %s176 = sphi 0, %s178
      %s179 = sphi 0, %s176
      %s180 = sphi 0, %s179
      %s196 = sphi 0, %s180
    $region4: #{quaternion_decoder_layer.3} parent=1 // loop_header_branch
      %17 = sbr.rel (%p15) target = $region8
    $region5: #{quaternion_decoder_layer.3} parent=1 // loop_body
      %s19 = ssub.s32 %s14, 1
      %s20 = ssub.s32 %s14, 2
      %s21 = sadd.s32 %s14, 1
      %s22 = ssub.s32 %s14, %s21
      %p23 = scmp.eq.s32.totalorder %s22, 0
      %s25 = sadd.s32 %s24, 1
      %s26 = scalar_select %p23, %s24, %s25
      %p29 = pneg %p23
      %p30 = scmp.eq.s32.totalorder %s14, 1
      %p31 = por %p29, %p30
      %p32 = scmp.ne.s32.totalorder %s24, %s27
      %p33 = scmp.eq.s32.totalorder %s14, 0
      %p34 = por %p32, %p33
      %p35 = scmp.ne.s32.totalorder %s24, %s27
      %p36 = scmp.eq.s32.totalorder %s19, 1
      %p37 = por %p35, %p36
      %p38 = scmp.ne.s32.totalorder %s27, %s28
      %p39 = scmp.eq.s32.totalorder %s19, 0
      %p40 = por %p38, %p39
      %p41 = scmp.ne.s32.totalorder %s27, %s28
      %p42 = scmp.eq.s32.totalorder %s20, 1
      %p43 = por %p41, %p42
      %p45 = scmp.ne.s32.totalorder %s28, %s44
      %p46 = scmp.eq.s32.totalorder %s20, 0
      %p47 = por %p45, %p46
      %s49 = sadd.s32 %s48, 1
      %p52 = scmp.eq.s32.totalorder %s14, 1
      %p53 = scmp.ne.s32.totalorder %s48, %s50
      %p54 = scmp.eq.s32.totalorder %s14, 0
      %p55 = por %p53, %p54
      %p56 = scmp.ne.s32.totalorder %s48, %s50
      %p57 = scmp.eq.s32.totalorder %s19, 1
      %p58 = por %p56, %p57
      %p59 = scmp.ne.s32.totalorder %s50, %s51
      %p60 = scmp.eq.s32.totalorder %s19, 0
      %p61 = por %p59, %p60
      %p62 = scmp.ne.s32.totalorder %s50, %s51
      %p63 = scmp.eq.s32.totalorder %s20, 1
      %p64 = por %p62, %p63
      %p66 = scmp.ne.s32.totalorder %s51, %s65
      %p67 = scmp.eq.s32.totalorder %s20, 0
      %p68 = por %p66, %p67
      %s70 = sadd.s32 %s69, 1
      %p73 = scmp.eq.s32.totalorder %s14, 1
      %p74 = scmp.ne.s32.totalorder %s69, %s71
      %p75 = scmp.eq.s32.totalorder %s14, 0
      %p76 = por %p74, %p75
      %p77 = scmp.ne.s32.totalorder %s69, %s71
      %p78 = scmp.eq.s32.totalorder %s19, 1
      %p79 = por %p77, %p78
      %p80 = scmp.ne.s32.totalorder %s71, %s72
      %p81 = scmp.eq.s32.totalorder %s19, 0
      %p82 = por %p80, %p81
      %p83 = scmp.ne.s32.totalorder %s71, %s72
      %p84 = scmp.eq.s32.totalorder %s20, 1
      %p85 = por %p83, %p84
      %p87 = scmp.ne.s32.totalorder %s72, %s86
      %p88 = scmp.eq.s32.totalorder %s20, 0
      %p89 = por %p87, %p88
      %s91 = sadd.s32 %s90, 1
      %p94 = scmp.eq.s32.totalorder %s14, 1
      %p95 = scmp.ne.s32.totalorder %s90, %s92
      %p96 = scmp.eq.s32.totalorder %s14, 0
      %p97 = por %p95, %p96
      %p98 = scmp.ne.s32.totalorder %s90, %s92
      %p99 = scmp.eq.s32.totalorder %s19, 1
      %p100 = por %p98, %p99
      %p101 = scmp.ne.s32.totalorder %s92, %s93
      %p102 = scmp.eq.s32.totalorder %s19, 0
      %p103 = por %p101, %p102
      %p104 = scmp.ne.s32.totalorder %s92, %s93
      %p105 = scmp.eq.s32.totalorder %s20, 1
      %p106 = por %p104, %p105
      %p108 = scmp.ne.s32.totalorder %s93, %s107
      %p109 = scmp.eq.s32.totalorder %s20, 0
      %p110 = por %p108, %p109
      %s112 = sadd.s32 %s111, 1
      %p115 = scmp.eq.s32.totalorder %s14, 1
      %p116 = scmp.ne.s32.totalorder %s111, %s113
      %p117 = scmp.eq.s32.totalorder %s14, 0
      %p118 = por %p116, %p117
      %p119 = scmp.ne.s32.totalorder %s111, %s113
      %p120 = scmp.eq.s32.totalorder %s19, 1
      %p121 = por %p119, %p120
      %p122 = scmp.ne.s32.totalorder %s113, %s114
      %p123 = scmp.eq.s32.totalorder %s19, 0
      %p124 = por %p122, %p123
      %p125 = scmp.ne.s32.totalorder %s113, %s114
      %p126 = scmp.eq.s32.totalorder %s20, 1
      %p127 = por %p125, %p126
      %p129 = scmp.ne.s32.totalorder %s114, %s128
      %p130 = scmp.eq.s32.totalorder %s20, 0
      %p131 = por %p129, %p130
      %s133 = sadd.s32 %s132, 1
      %p136 = scmp.eq.s32.totalorder %s14, 1
      %p137 = scmp.ne.s32.totalorder %s132, %s134
      %p138 = scmp.eq.s32.totalorder %s14, 0
      %p139 = por %p137, %p138
      %p140 = scmp.ne.s32.totalorder %s132, %s134
      %p141 = scmp.eq.s32.totalorder %s19, 1
      %p142 = por %p140, %p141
      %p143 = scmp.ne.s32.totalorder %s134, %s135
      %p144 = scmp.eq.s32.totalorder %s19, 0
      %p145 = por %p143, %p144
      %p146 = scmp.ne.s32.totalorder %s134, %s135
      %p147 = scmp.eq.s32.totalorder %s20, 1
      %p148 = por %p146, %p147
      %p150 = scmp.ne.s32.totalorder %s135, %s149
      %p151 = scmp.eq.s32.totalorder %s20, 0
      %p152 = por %p150, %p151
      %s154 = sadd.s32 %s153, 1
      %p157 = scmp.eq.s32.totalorder %s14, 1
      %p158 = scmp.ne.s32.totalorder %s153, %s155
      %p159 = scmp.eq.s32.totalorder %s14, 0
      %p160 = por %p158, %p159
      %p161 = scmp.ne.s32.totalorder %s153, %s155
      %p162 = scmp.eq.s32.totalorder %s19, 1
      %p163 = por %p161, %p162
      %p164 = scmp.ne.s32.totalorder %s155, %s156
      %p165 = scmp.eq.s32.totalorder %s19, 0
      %p166 = por %p164, %p165
      %p167 = scmp.ne.s32.totalorder %s155, %s156
      %p168 = scmp.eq.s32.totalorder %s20, 1
      %p169 = por %p167, %p168
      %p171 = scmp.ne.s32.totalorder %s156, %s170
      %p172 = scmp.eq.s32.totalorder %s20, 0
      %p173 = por %p171, %p172
      %s174 = ssub.s32 %s14, %s21
      %p175 = scmp.eq.s32.totalorder %s174, 0
      %s177 = sadd.s32 %s176, 1
      %s178 = scalar_select %p175, %s176, %s177
      %p181 = pneg %p175
      %p182 = scmp.eq.s32.totalorder %s14, 1
      %p183 = por %p181, %p182
      %p184 = scmp.ne.s32.totalorder %s176, %s179
      %p185 = scmp.eq.s32.totalorder %s14, 0
      %p186 = por %p184, %p185
      %p187 = scmp.ne.s32.totalorder %s176, %s179
      %p188 = scmp.eq.s32.totalorder %s19, 1
      %p189 = por %p187, %p188
      %p190 = scmp.ne.s32.totalorder %s179, %s180
      %p191 = scmp.eq.s32.totalorder %s19, 0
      %p192 = por %p190, %p191
      %p193 = scmp.ne.s32.totalorder %s179, %s180
      %p194 = scmp.eq.s32.totalorder %s20, 1
      %p195 = por %p193, %p194
      %p197 = scmp.ne.s32.totalorder %s180, %s196
      %p198 = scmp.eq.s32.totalorder %s20, 0
      %p199 = por %p197, %p198
      %p200 = scmp.le.s32.totalorder 1, %s14
      %p201 = scmp.lt.s32.totalorder %s14, 3
      %p202 = pnand %p200, %p201
      %p203 = pneg %p202
      // Predicated region
      $region9: #{quaternion_decoder_layer.3} parent=5 // pred_check
        _
      $region10: #{quaternion_decoder_layer.3} parent=5 // pred_check_branch
        %205 = sbr.rel (%p202) target = $region12
      $region11: #{quaternion_decoder_layer.3} parent=5 // pred_region
        %s206 = ssub.s32 %s14, 1
        // Predicated region
        $region13: #{quaternion_decoder_layer.3} parent=11 // pred_check
          %p207 = pneg %p61
        $region14: #{quaternion_decoder_layer.3} parent=11 // pred_check_branch
          %209 = sbr.rel (%p207) target = $region16
        $region15: #{quaternion_decoder_layer.3} parent=11 // pred_region
          %211 = vsyncadd [#allocation3], 0
          %s212 = sshll.u32 %s1, 4
          %s213 = int_to_ptr.hbm [resolvable:$true] %s212
          %s214 = sshll.u32 [#allocation2], 4
          %s215 = int_to_ptr.vmem [resolvable:$true] %s214
          %220 = dma.hbm_to_vmem [thread:$0]  %s213, 2048, %s215, [#allocation3], 256, 256, 16
        $region16: #{quaternion_decoder_layer.3} parent=11 // pred_fallthru
          _
        // Predicated region
        $region17: #{quaternion_decoder_layer.3} parent=11 // pred_check
          %p221 = pneg %p82
        $region18: #{quaternion_decoder_layer.3} parent=11 // pred_check_branch
          %223 = sbr.rel (%p221) target = $region20
        $region19: #{quaternion_decoder_layer.3} parent=11 // pred_region
          _
        $region20: #{quaternion_decoder_layer.3} parent=11 // pred_fallthru
          _
        // Predicated region
        $region21: #{quaternion_decoder_layer.3} parent=11 // pred_check
          %p224 = pneg %p103
        $region22: #{quaternion_decoder_layer.3} parent=11 // pred_check_branch
          %226 = sbr.rel (%p224) target = $region24
        $region23: #{quaternion_decoder_layer.3} parent=11 // pred_region
          _
        $region24: #{quaternion_decoder_layer.3} parent=11 // pred_fallthru
          _
        // Predicated region
        $region25: #{quaternion_decoder_layer.3} parent=11 // pred_check
          %p227 = pneg %p124
        $region26: #{quaternion_decoder_layer.3} parent=11 // pred_check_branch
          %229 = sbr.rel (%p227) target = $region28
        $region27: #{quaternion_decoder_layer.3} parent=11 // pred_region
          _
        $region28: #{quaternion_decoder_layer.3} parent=11 // pred_fallthru
          _
        // Predicated region
        $region29: #{quaternion_decoder_layer.3} parent=11 // pred_check
          %p230 = pneg %p145
        $region30: #{quaternion_decoder_layer.3} parent=11 // pred_check_branch
          %232 = sbr.rel (%p230) target = $region32
        $region31: #{quaternion_decoder_layer.3} parent=11 // pred_region
          _
        $region32: #{quaternion_decoder_layer.3} parent=11 // pred_fallthru
          _
        // Predicated region
        $region33: #{quaternion_decoder_layer.3} parent=11 // pred_check
          %p233 = pneg %p166
        $region34: #{quaternion_decoder_layer.3} parent=11 // pred_check_branch
          %235 = sbr.rel (%p233) target = $region36
        $region35: #{quaternion_decoder_layer.3} parent=11 // pred_region
          _
        $region36: #{quaternion_decoder_layer.3} parent=11 // pred_fallthru
          _
      $region12: #{quaternion_decoder_layer.3} parent=5 // pred_fallthru
        _
      %p236 = scmp.lt.s32.totalorder %s14, 2
      // Predicated region
      $region37: #{quaternion_decoder_layer.3} parent=5 // pred_check
        %p237 = pneg %p236
      $region38: #{quaternion_decoder_layer.3} parent=5 // pred_check_branch
        %239 = sbr.rel (%p237) target = $region40
      $region39: #{quaternion_decoder_layer.3} parent=5 // pred_region
        // Predicated region
        $region41: #{quaternion_decoder_layer.3} parent=39 // pred_check
          %p240 = pneg %p34
        $region42: #{quaternion_decoder_layer.3} parent=39 // pred_check_branch
          %242 = sbr.rel (%p240) target = $region44
        $region43: #{quaternion_decoder_layer.3} parent=39 // pred_region
          %p243 = scmp.lt.s32.totalorder %s14, 1
          %s244 = scalar_select %p243, %s14, 1
          %s245 = smul.addr %s244, 8
          %s246 = scalar_lea.vmem %s0, %s245
        $region44: #{quaternion_decoder_layer.3} parent=39 // pred_fallthru
          _
      $region40: #{quaternion_decoder_layer.3} parent=5 // pred_fallthru
        _
      %p247 = scmp.le.s32.totalorder 1, %s14
      %p248 = scmp.lt.s32.totalorder %s14, 3
      %p249 = pnand %p247, %p248
      %p250 = pneg %p249
      // Predicated region
      $region45: #{quaternion_decoder_layer.3} parent=5 // pred_check
        _
      $region46: #{quaternion_decoder_layer.3} parent=5 // pred_check_branch
        %252 = sbr.rel (%p249) target = $region48
      $region47: #{quaternion_decoder_layer.3} parent=5 // pred_region
        %s253 = ssub.s32 %s14, 1
        // Predicated region
        $region49: #{quaternion_decoder_layer.3} parent=47 // pred_check
          %p254 = pneg %p61
        $region50: #{quaternion_decoder_layer.3} parent=47 // pred_check_branch
          %256 = sbr.rel (%p254) target = $region52
        $region51: #{quaternion_decoder_layer.3} parent=47 // pred_region
          %258 = dma.done [#allocation3], 2048
        $region52: #{quaternion_decoder_layer.3} parent=47 // pred_fallthru
          _
        %p259 = scmp.lt.s32.totalorder %s19, 1
        %s260 = scalar_select %p259, %s19, 1
        %s261 = smul.addr %s260, 8
        %s262 = scalar_lea.vmem %s0, %s261
        %p263 = pneg %p40
        %p264 = pneg %p37
        %p265 = pneg %p61
        %p266 = pneg %p58
        %p267 = pneg %p82
        %p268 = pneg %p79
        %p269 = pneg %p103
        %p270 = pneg %p100
        %p271 = pneg %p124
        %p272 = pneg %p121
        %p273 = pneg %p145
        %p274 = pneg %p142
        %p275 = pneg %p166
        %p276 = pneg %p163
        %p277 = pneg %p192
        %p278 = pneg %p189
        %p279 = scmp.lt.s32.totalorder %s19, 1
        %s280 = scalar_select %p279, %s19, 1
        %s281 = smul.addr %s280, 8
        %s282 = scalar_lea.vmem %s7, %s281
        %p283 = scmp.lt.s32.totalorder %s19, 1
        %s284 = scalar_select %p283, %s19, 1
        %s285 = smul.addr %s284, 8
        %s286 = scalar_lea.vmem %s0, %s285
        %p287 = scmp.lt.s32.totalorder %s19, 1
        %s288 = scalar_select %p287, %s19, 1
        %s289 = smul.addr %s288, 8
        %s290 = scalar_lea.vmem %s7, %s289
        %v291 = vld [vmem:[%s286] sm:$0xff]
        %v292 = vld [vmem:[#allocation2] sm:$0xff]
        %v293 = vld [vmem:[#allocation2 + $0x8] sm:$0xff]
        %v294 = vld [vmem:[#allocation2 + $0x10] sm:$0xff]
        %v295 = vld [vmem:[#allocation2 + $0x18] sm:$0xff]
        %v296 = vld [vmem:[#allocation2 + $0x20] sm:$0xff]
        %v297 = vld [vmem:[#allocation2 + $0x28] sm:$0xff]
        %v298 = vld [vmem:[#allocation2 + $0x30] sm:$0xff]
        %v299 = vld [vmem:[#allocation2 + $0x38] sm:$0xff]
        %v300 = vld [vmem:[#allocation2 + $0x40] sm:$0xff]
        %v301 = vld [vmem:[#allocation2 + $0x48] sm:$0xff]
        %v302 = vld [vmem:[#allocation2 + $0x50] sm:$0xff]
        %v303 = vld [vmem:[#allocation2 + $0x58] sm:$0xff]
        %v304 = vld [vmem:[#allocation2 + $0x60] sm:$0xff]
        %v305 = vld [vmem:[#allocation2 + $0x68] sm:$0xff]
        %v306 = vld [vmem:[#allocation2 + $0x70] sm:$0xff]
        %v307 = vld [vmem:[#allocation2 + $0x78] sm:$0xff]
        %v308 = vld [vmem:[%s2] sm:$0x3]
        %v310 = vperm.slane %v308, 0
        %v311 = vperm.slane %v308, 1
        %vm314 = vcmask 523264
        %v316 = vsel %vm314, %v291, 0
        %318 = vmatpush.msra.mxu0 0.0
        %319 = vmatpush.msra.mxu0 0.0
        %320 = vmatpush.msra.mxu0 0.0
        %321 = vmatpush.msra.mxu0 0.0
        %322 = vmatpush.msra.mxu0 0.0
        %323 = vmatpush.msra.mxu0 0.0
        %324 = vmatpush.msra.mxu0 0.0
        %325 = vmatpush.msra.mxu0 0.0
        %326 = vmatpush.msra.mxu0 %v306
        %327 = vmatpush.msra.mxu0 %v304
        %328 = vmatpush.msra.mxu0 %v302
        %329 = vmatpush.msra.mxu0 %v300
        %330 = vmatpush.msra.mxu0 %v298
        %331 = vmatpush.msra.mxu0 %v296
        %332 = vmatpush.msra.mxu0 %v294
        %333 = vmatpush.msra.mxu0 %v292
        %334 = vmatmul.f32.gmra.mxu0 %v316
        %v335 = vpop.f32.mrf.mxu0
        %v336 = vadd.f32 %v310, %v335
        %337 = vdwg.mxu0
        %338 = vmatpush.msra.mxu0 0.0
        %339 = vmatpush.msra.mxu0 0.0
        %340 = vmatpush.msra.mxu0 0.0
        %341 = vmatpush.msra.mxu0 0.0
        %342 = vmatpush.msra.mxu0 0.0
        %343 = vmatpush.msra.mxu0 0.0
        %344 = vmatpush.msra.mxu0 0.0
        %345 = vmatpush.msra.mxu0 0.0
        %346 = vmatpush.msra.mxu0 %v307
        %347 = vmatpush.msra.mxu0 %v305
        %348 = vmatpush.msra.mxu0 %v303
        %349 = vmatpush.msra.mxu0 %v301
        %350 = vmatpush.msra.mxu0 %v299
        %351 = vmatpush.msra.mxu0 %v297
        %352 = vmatpush.msra.mxu0 %v295
        %353 = vmatpush.msra.mxu0 %v293
        %354 = vmatmul.f32.gmra.mxu0 %v316
        %v355 = vpop.f32.mrf.mxu0
        %v356 = vadd.f32 %v311, %v355
        %357 = vdwg.mxu0
        %v358 = vld [vmem:[%s3] sm:$0xff]
        %v359 = vld [vmem:[%s3 + $0x8] sm:$0xff]
        %v360 = vld [vmem:[%s3 + $0x10] sm:$0xff]
        %v361 = vld [vmem:[%s3 + $0x18] sm:$0xff]
        %v362 = vld [vmem:[%s3 + $0x20] sm:$0xff]
        %v363 = vld [vmem:[%s3 + $0x28] sm:$0xff]
        %v364 = vld [vmem:[%s3 + $0x30] sm:$0xff]
        %v365 = vld [vmem:[%s3 + $0x38] sm:$0xff]
        %v366 = vld [vmem:[%s4] sm:$0x1]
        %v367 = vld [vmem:[%s5] sm:$0x1]
        %v368 = vld [vmem:[%s6] sm:$0x1]
        %370 = vrot.lane.b32.xlu0 %v336, 64
        %v371 = vpop.permute.xlu0 %370
        %vm372 = vcmask 261120
        %v373 = vsel %vm372, %v336, 0
        %v375 = vsel %vm372, %v371, 0
        %377 = vmatpush.xpose.msra.mxu0 0.0
        %378 = vmatpush.xpose.msra.mxu0 0.0
        %379 = vmatpush.xpose.msra.mxu0 0.0
        %380 = vmatpush.xpose.msra.mxu0 0.0
        %381 = vmatpush.xpose.msra.mxu0 0.0
        %382 = vmatpush.xpose.msra.mxu0 0.0
        %383 = vmatpush.xpose.msra.mxu0 0.0
        %384 = vmatpush.xpose.msra.mxu0 0.0
        %385 = vmatpush.xpose.msra.mxu0 0.0
        %386 = vmatpush.xpose.msra.mxu0 0.0
        %387 = vmatpush.xpose.msra.mxu0 0.0
        %388 = vmatpush.xpose.msra.mxu0 0.0
        %389 = vmatpush.xpose.msra.mxu0 0.0
        %390 = vmatpush.xpose.msra.mxu0 0.0
        %391 = vmatpush.xpose.msra.mxu0 0.0
        %392 = vmatpush.xpose.msra.mxu0 %v375
        %393 = vmatmul.f32.gmra.mxu0 %v373
        %v394 = vpop.f32.mrf.mxu0
        %v395 = vadd.f32 0.0, %v394
        %396 = vdwg.mxu0
        %v397 = vmul.f32 %v395, 0.17677669
        %vm398 = vcmask 64512
        %v399 = vsel %vm398, %v397, -inf
        %400 = vmax.xlane.f32.xlu0 %v399
        %v401 = vpop.xlane.xlu0 %400
        %v402 = vsub.f32 %v397, %v401
        %v403 = vmul.f32 %v402, 1.442695
        %v404 = vpow.pop %v403
        %v405 = vsel %vm398, %v404, 0.0
        %406 = vadd.xlane.f32.xlu0 %v405
        %v407 = vpop.xlane.xlu0 %406
        %v408 = vrcp.pop %v407
        %v409 = vmul.f32 %v404, %v408
        %v411 = vsel %vm398, %v409, 0
        %413 = vmatpush.msra.mxu0 0.0
        %414 = vmatpush.msra.mxu0 0.0
        %415 = vmatpush.msra.mxu0 0.0
        %416 = vmatpush.msra.mxu0 0.0
        %417 = vmatpush.msra.mxu0 0.0
        %418 = vmatpush.msra.mxu0 0.0
        %419 = vmatpush.msra.mxu0 0.0
        %420 = vmatpush.msra.mxu0 0.0
        %421 = vmatpush.msra.mxu0 0.0
        %422 = vmatpush.msra.mxu0 0.0
        %423 = vmatpush.msra.mxu0 0.0
        %424 = vmatpush.msra.mxu0 0.0
        %425 = vmatpush.msra.mxu0 0.0
        %426 = vmatpush.msra.mxu0 0.0
        %427 = vmatpush.msra.mxu0 0.0
        %428 = vmatpush.msra.mxu0 %v356
        %429 = vmatmul.f32.gmra.mxu0 %v411
        %v430 = vpop.f32.mrf.mxu0
        %v431 = vadd.f32 0.0, %v430
        %432 = vdwg.mxu0
        %433 = vrot.lane.b32.xlu0 %v336, 96
        %v434 = vpop.permute.xlu0 %433
        %435 = vrot.lane.b32.xlu0 %v336, 32
        %v436 = vpop.permute.xlu0 %435
        %v437 = vsel %vm372, %v434, 0
        %v439 = vsel %vm372, %v436, 0
        %441 = vmatpush.xpose.msra.mxu0 0.0
        %442 = vmatpush.xpose.msra.mxu0 0.0
        %443 = vmatpush.xpose.msra.mxu0 0.0
        %444 = vmatpush.xpose.msra.mxu0 0.0
        %445 = vmatpush.xpose.msra.mxu0 0.0
        %446 = vmatpush.xpose.msra.mxu0 0.0
        %447 = vmatpush.xpose.msra.mxu0 0.0
        %448 = vmatpush.xpose.msra.mxu0 0.0
        %449 = vmatpush.xpose.msra.mxu0 0.0
        %450 = vmatpush.xpose.msra.mxu0 0.0
        %451 = vmatpush.xpose.msra.mxu0 0.0
        %452 = vmatpush.xpose.msra.mxu0 0.0
        %453 = vmatpush.xpose.msra.mxu0 0.0
        %454 = vmatpush.xpose.msra.mxu0 0.0
        %455 = vmatpush.xpose.msra.mxu0 0.0
        %456 = vmatpush.xpose.msra.mxu0 %v439
        %457 = vmatmul.f32.gmra.mxu0 %v437
        %v458 = vpop.f32.mrf.mxu0
        %v459 = vadd.f32 0.0, %v458
        %460 = vdwg.mxu0
        %v461 = vmul.f32 %v459, 0.17677669
        %v462 = vsel %vm398, %v461, -inf
        %463 = vmax.xlane.f32.xlu0 %v462
        %v464 = vpop.xlane.xlu0 %463
        %v465 = vsub.f32 %v461, %v464
        %v466 = vmul.f32 %v465, 1.442695
        %v467 = vpow.pop %v466
        %v468 = vsel %vm398, %v467, 0.0
        %469 = vadd.xlane.f32.xlu0 %v468
        %v470 = vpop.xlane.xlu0 %469
        %v471 = vrcp.pop %v470
        %v472 = vmul.f32 %v467, %v471
        %474 = vrot.lane.b32.xlu0 %v356, 96
        %v475 = vpop.permute.xlu0 %474
        %v478 = vsel %vm398, %v472, 0
        %480 = vmatpush.msra.mxu0 0.0
        %481 = vmatpush.msra.mxu0 0.0
        %482 = vmatpush.msra.mxu0 0.0
        %483 = vmatpush.msra.mxu0 0.0
        %484 = vmatpush.msra.mxu0 0.0
        %485 = vmatpush.msra.mxu0 0.0
        %486 = vmatpush.msra.mxu0 0.0
        %487 = vmatpush.msra.mxu0 0.0
        %488 = vmatpush.msra.mxu0 0.0
        %489 = vmatpush.msra.mxu0 0.0
        %490 = vmatpush.msra.mxu0 0.0
        %491 = vmatpush.msra.mxu0 0.0
        %492 = vmatpush.msra.mxu0 0.0
        %493 = vmatpush.msra.mxu0 0.0
        %494 = vmatpush.msra.mxu0 0.0
        %495 = vmatpush.msra.mxu0 %v475
        %496 = vmatmul.f32.gmra.mxu0 %v478
        %v497 = vpop.f32.mrf.mxu0
        %v498 = vadd.f32 0.0, %v497
        %499 = vdwg.mxu0
        %501 = vrot.lane.b32.xlu0 %v498, 32
        %v502 = vpop.permute.xlu0 %501
        %v504 = vsel %vm372, %v431, %v502
        %v506 = vperm.slane %v366, 0
        %v509 = vsel %vm314, %v504, 0
        %511 = vmatpush.msra.mxu0 0.0
        %512 = vmatpush.msra.mxu0 0.0
        %513 = vmatpush.msra.mxu0 0.0
        %514 = vmatpush.msra.mxu0 0.0
        %515 = vmatpush.msra.mxu0 0.0
        %516 = vmatpush.msra.mxu0 0.0
        %517 = vmatpush.msra.mxu0 0.0
        %518 = vmatpush.msra.mxu0 0.0
        %519 = vmatpush.msra.mxu0 %v365
        %520 = vmatpush.msra.mxu0 %v364
        %521 = vmatpush.msra.mxu0 %v363
        %522 = vmatpush.msra.mxu0 %v362
        %523 = vmatpush.msra.mxu0 %v361
        %524 = vmatpush.msra.mxu0 %v360
        %525 = vmatpush.msra.mxu0 %v359
        %526 = vmatpush.msra.mxu0 %v358
        %527 = vmatmul.f32.gmra.mxu0 %v509
        %v528 = vpop.f32.mrf.mxu0
        %v529 = vadd.f32 %v506, %v528
        %530 = vdwg.mxu0
        %v531 = vadd.f32 %v529, %v291
        %v532 = vmul.f32 %v531, %v531
        %534 = vrot.lane.b32.xlu0 %v532, 112
        %v535 = vpop.permute.xlu0 %534
        %v537 = vadd.f32 %v532, %v535
        %538 = vrot.lane.b32.xlu0 %v532, 96
        %v539 = vpop.permute.xlu0 %538
        %v541 = vadd.f32 %v537, %v539
        %542 = vrot.lane.b32.xlu0 %v532, 80
        %v543 = vpop.permute.xlu0 %542
        %v545 = vadd.f32 %v541, %v543
        %v546 = vadd.f32 %v545, 1e-06
        %v547 = vrsqrt.pop %v546
        %v548 = vmul.f32 %v547, %v546
        %v549 = vmul.f32 %v548, %v547
        %v550 = vmul.f32 0.5, %v549
        %v551 = vsub.f32 1.5, %v550
        %v552 = vmul.f32 %v547, %v551
        %v553 = vmul.f32 %v546, %v552
        %vm554 = vcmp.eq.f32.partialorder %v546, inf
        %v555 = vsel %vm554, %v546, %v553
        %vm556 = vcmp.eq.f32.partialorder %v546, 0.0
        %v557 = vand.u32 %v546, 2147483648
        %v558 = vsel %vm556, %v557, %v555
        %v559 = vadd.f32 %v558, 1e-06
        %v560 = vrcp.pop %v559
        %v561 = vmul.f32 %v531, %v560
        %563 = vrot.lane.b32.xlu0 %v560, 16
        %v564 = vpop.permute.xlu0 %563
        %v566 = vmul.f32 %v531, %v564
        %567 = vrot.lane.b32.xlu0 %v560, 32
        %v568 = vpop.permute.xlu0 %567
        %v570 = vmul.f32 %v531, %v568
        %571 = vrot.lane.b32.xlu0 %v560, 48
        %v572 = vpop.permute.xlu0 %571
        %v574 = vmul.f32 %v531, %v572
        %vm575 = vcmask 130048
        %v576 = vsel %vm575, %v561, %v566
        %v577 = vsel %vm372, %v576, %v570
        %vm578 = vcmask 392192
        %v579 = vsel %vm578, %v577, %v574
        %v581 = vperm.slane %v367, 0
        %v583 = vmul.f32 %v581, %v579
        %v585 = vperm.slane %v368, 0
        %v587 = vadd.f32 %v583, %v585
        %588 = vst.msk [vmem:[%s290] sm:$0xff] %vm314, %v587
        %p589 = scmp.lt.s32.totalorder %s19, 1
        %s590 = scalar_select %p589, %s19, 1
        %s591 = smul.addr %s590, 8
        %s592 = scalar_lea.vmem %s7, %s591
        // Predicated region
        $region53: #{quaternion_decoder_layer.3} parent=47 // pred_check
          %p593 = pneg %p189
        $region54: #{quaternion_decoder_layer.3} parent=47 // pred_check_branch
          %595 = sbr.rel (%p593) target = $region56
        $region55: #{quaternion_decoder_layer.3} parent=47 // pred_region
          _
        $region56: #{quaternion_decoder_layer.3} parent=47 // pred_fallthru
          _
      $region48: #{quaternion_decoder_layer.3} parent=5 // pred_fallthru
        _
      %p596 = scmp.le.s32.totalorder 2, %s14
      // Predicated region
      $region57: #{quaternion_decoder_layer.3} parent=5 // pred_check
        %p597 = pneg %p596
      $region58: #{quaternion_decoder_layer.3} parent=5 // pred_check_branch
        %599 = sbr.rel (%p597) target = $region60
      $region59: #{quaternion_decoder_layer.3} parent=5 // pred_region
        %s600 = ssub.s32 %s14, 2
        // Predicated region
        $region61: #{quaternion_decoder_layer.3} parent=59 // pred_check
          %p601 = pneg %p195
        $region62: #{quaternion_decoder_layer.3} parent=59 // pred_check_branch
          %603 = sbr.rel (%p601) target = $region64
        $region63: #{quaternion_decoder_layer.3} parent=59 // pred_region
          %p604 = scmp.lt.s32.totalorder %s20, 1
          %s605 = scalar_select %p604, %s20, 1
          %s606 = smul.addr %s605, 8
          %s607 = scalar_lea.vmem %s7, %s606
        $region64: #{quaternion_decoder_layer.3} parent=59 // pred_fallthru
          _
      $region60: #{quaternion_decoder_layer.3} parent=5 // pred_fallthru
        _
    $region6: #{quaternion_decoder_layer.3} parent=1 // loop_footer
      %s18 = sadd.s32 1, %s14
    $region7: #{quaternion_decoder_layer.3} parent=1 // loop_footer_branch
      %13 = sbr.rel target = $region3
    $region8: #{quaternion_decoder_layer.3} parent=1 // loop_exit
      _
    %608 = vsyncpa [#allocation3], 1
    %s609 = scalar_lea.sflag [#allocation3], 1
    %610 = vsyncpa %s609, 1

// kernel: quaternion_decoder_layer.4
$region0: #{quaternion_decoder_layer.4}
  #allocation0 [shape = 'u32[]', space=smem, size = 0x4, offset = 0x4, fixed_abs, tag = 'smem constant byte address 0x4 - core index']
  #allocation1 [shape = 'u32[72,128]{1,0:T(1,128)}', space=vmem, size = 0x9000, scoped, tag = 'internal scratch']
  %s0 = inlined_call_operand.vmem [shape: f32[2,8,64], index: 0, kind: input, shape index: {}]
  %s1 = inlined_call_operand.vmem [shape: f32[2,12,64], index: 1, kind: input, shape index: {}]
  %s2 = inlined_call_operand.vmem [shape: f32[64,64], index: 2, kind: input, shape index: {}]
  %s3 = inlined_call_operand.vmem [shape: f32[1,64], index: 3, kind: input, shape index: {}]
  %s4 = inlined_call_operand.hbm [shape: f32[64,128], index: 4, kind: input, shape index: {}]
  %s5 = inlined_call_operand.vmem [shape: f32[1,128], index: 5, kind: input, shape index: {}]
  %s6 = inlined_call_operand.hbm [shape: f32[64,64], index: 6, kind: input, shape index: {}]
  %s7 = inlined_call_operand.vmem [shape: f32[1,64], index: 7, kind: input, shape index: {}]
  %s8 = inlined_call_operand.vmem [shape: f32[1,64], index: 8, kind: input, shape index: {}]
  %s9 = inlined_call_operand.vmem [shape: f32[1,64], index: 9, kind: input, shape index: {}]
  %s10 = inlined_call_operand.vmem [shape: f32[2,8,64], index: 10, kind: output, shape index: {}]
  %s11 = sld [smem:[#allocation0]]
  $region81: #{quaternion_decoder_layer.4} parent=0
    _
  %s13 = ssub.s32 1, %s11
  %s14 = scalar_select 0, %s13, %s11
  $region1: #{quaternion_decoder_layer.4} parent=0
    #allocation2 [shape = 'u8[32768]{0}', space=vmem, size = 0x8000, scoped, tag = 'input window, operand 4, single buffered']
    #allocation3 [shape = 's32[2]{0}', space=sflag, size = 0x8, scoped, tag = 'scoped memory for quaternion_decoder_layer.4']
    #allocation4 [shape = 'u8[32768]{0}', space=vmem, size = 0x8000, scoped, tag = 'input window, operand 6, single buffered']
    #allocation5 [shape = 's32[1]{0}', space=sflag, size = 0x4, scoped, tag = 'scoped memory for quaternion_decoder_layer.4']
    %15 = vsyncpa [#allocation3], 0
    %16 = vsyncpa [#allocation5], 0
    loop: start=0, step=1, limit=4
    $region2: #{quaternion_decoder_layer.4} parent=1 // loop_pre_header
      _
    $region3: #{quaternion_decoder_layer.4} parent=1 // loop_header
      %s18 = sphi 0, %s22
      %p19 = scmp.ge.s32.totalorder %s18, 4
      %s28 = sphi 0, %s30
      %s31 = sphi 0, %s28
      %s32 = sphi 0, %s31
      %s48 = sphi 0, %s32
      %s54 = sphi 0, %s56
      %s57 = sphi 0, %s54
      %s58 = sphi 0, %s57
      %s74 = sphi 0, %s58
      %s78 = sphi 0, %s78
      %s80 = sphi 0, %s78
      %s81 = sphi 0, %s80
      %s95 = sphi 0, %s81
      %s99 = sphi 0, %s99
      %s101 = sphi 0, %s99
      %s102 = sphi 0, %s101
      %s116 = sphi 0, %s102
      %s120 = sphi 0, %s120
      %s122 = sphi 0, %s120
      %s123 = sphi 0, %s122
      %s137 = sphi 0, %s123
      %s141 = sphi 0, %s141
      %s143 = sphi 0, %s141
      %s144 = sphi 0, %s143
      %s158 = sphi 0, %s144
      %s162 = sphi 0, %s162
      %s164 = sphi 0, %s162
      %s165 = sphi 0, %s164
      %s179 = sphi 0, %s165
      %s183 = sphi 0, %s183
      %s185 = sphi 0, %s183
      %s186 = sphi 0, %s185
      %s200 = sphi 0, %s186
      %s204 = sphi 0, %s204
      %s206 = sphi 0, %s204
      %s207 = sphi 0, %s206
      %s221 = sphi 0, %s207
      %s225 = sphi 0, %s225
      %s227 = sphi 0, %s225
      %s228 = sphi 0, %s227
      %s242 = sphi 0, %s228
      %s248 = sphi 0, %s250
      %s251 = sphi 0, %s248
      %s252 = sphi 0, %s251
      %s268 = sphi 0, %s252
    $region4: #{quaternion_decoder_layer.4} parent=1 // loop_header_branch
      %21 = sbr.rel (%p19) target = $region8
    $region5: #{quaternion_decoder_layer.4} parent=1 // loop_body
      %s23 = ssub.s32 %s18, 1
      %s24 = ssub.s32 %s18, 2
      %s25 = sadd.s32 %s18, 1
      %s26 = ssub.s32 %s18, %s25
      %p27 = scmp.eq.s32.totalorder %s26, 0
      %s29 = sadd.s32 %s28, 1
      %s30 = scalar_select %p27, %s28, %s29
      %p33 = pneg %p27
      %p34 = scmp.eq.s32.totalorder %s18, 1
      %p35 = por %p33, %p34
      %p36 = scmp.ne.s32.totalorder %s28, %s31
      %p37 = scmp.eq.s32.totalorder %s18, 0
      %p38 = por %p36, %p37
      %p39 = scmp.ne.s32.totalorder %s28, %s31
      %p40 = scmp.eq.s32.totalorder %s23, 1
      %p41 = por %p39, %p40
      %p42 = scmp.ne.s32.totalorder %s31, %s32
      %p43 = scmp.eq.s32.totalorder %s23, 0
      %p44 = por %p42, %p43
      %p45 = scmp.ne.s32.totalorder %s31, %s32
      %p46 = scmp.eq.s32.totalorder %s24, 1
      %p47 = por %p45, %p46
      %p49 = scmp.ne.s32.totalorder %s32, %s48
      %p50 = scmp.eq.s32.totalorder %s24, 0
      %p51 = por %p49, %p50
      %s52 = ssub.s32 %s18, %s25
      %p53 = scmp.eq.s32.totalorder %s52, 0
      %s55 = sadd.s32 %s54, 1
      %s56 = scalar_select %p53, %s54, %s55
      %p59 = pneg %p53
      %p60 = scmp.eq.s32.totalorder %s18, 1
      %p61 = por %p59, %p60
      %p62 = scmp.ne.s32.totalorder %s54, %s57
      %p63 = scmp.eq.s32.totalorder %s18, 0
      %p64 = por %p62, %p63
      %p65 = scmp.ne.s32.totalorder %s54, %s57
      %p66 = scmp.eq.s32.totalorder %s23, 1
      %p67 = por %p65, %p66
      %p68 = scmp.ne.s32.totalorder %s57, %s58
      %p69 = scmp.eq.s32.totalorder %s23, 0
      %p70 = por %p68, %p69
      %p71 = scmp.ne.s32.totalorder %s57, %s58
      %p72 = scmp.eq.s32.totalorder %s24, 1
      %p73 = por %p71, %p72
      %p75 = scmp.ne.s32.totalorder %s58, %s74
      %p76 = scmp.eq.s32.totalorder %s24, 0
      %p77 = por %p75, %p76
      %s79 = sadd.s32 %s78, 1
      %p82 = scmp.eq.s32.totalorder %s18, 1
      %p83 = scmp.ne.s32.totalorder %s78, %s80
      %p84 = scmp.eq.s32.totalorder %s18, 0
      %p85 = por %p83, %p84
      %p86 = scmp.ne.s32.totalorder %s78, %s80
      %p87 = scmp.eq.s32.totalorder %s23, 1
      %p88 = por %p86, %p87
      %p89 = scmp.ne.s32.totalorder %s80, %s81
      %p90 = scmp.eq.s32.totalorder %s23, 0
      %p91 = por %p89, %p90
      %p92 = scmp.ne.s32.totalorder %s80, %s81
      %p93 = scmp.eq.s32.totalorder %s24, 1
      %p94 = por %p92, %p93
      %p96 = scmp.ne.s32.totalorder %s81, %s95
      %p97 = scmp.eq.s32.totalorder %s24, 0
      %p98 = por %p96, %p97
      %s100 = sadd.s32 %s99, 1
      %p103 = scmp.eq.s32.totalorder %s18, 1
      %p104 = scmp.ne.s32.totalorder %s99, %s101
      %p105 = scmp.eq.s32.totalorder %s18, 0
      %p106 = por %p104, %p105
      %p107 = scmp.ne.s32.totalorder %s99, %s101
      %p108 = scmp.eq.s32.totalorder %s23, 1
      %p109 = por %p107, %p108
      %p110 = scmp.ne.s32.totalorder %s101, %s102
      %p111 = scmp.eq.s32.totalorder %s23, 0
      %p112 = por %p110, %p111
      %p113 = scmp.ne.s32.totalorder %s101, %s102
      %p114 = scmp.eq.s32.totalorder %s24, 1
      %p115 = por %p113, %p114
      %p117 = scmp.ne.s32.totalorder %s102, %s116
      %p118 = scmp.eq.s32.totalorder %s24, 0
      %p119 = por %p117, %p118
      %s121 = sadd.s32 %s120, 1
      %p124 = scmp.eq.s32.totalorder %s18, 1
      %p125 = scmp.ne.s32.totalorder %s120, %s122
      %p126 = scmp.eq.s32.totalorder %s18, 0
      %p127 = por %p125, %p126
      %p128 = scmp.ne.s32.totalorder %s120, %s122
      %p129 = scmp.eq.s32.totalorder %s23, 1
      %p130 = por %p128, %p129
      %p131 = scmp.ne.s32.totalorder %s122, %s123
      %p132 = scmp.eq.s32.totalorder %s23, 0
      %p133 = por %p131, %p132
      %p134 = scmp.ne.s32.totalorder %s122, %s123
      %p135 = scmp.eq.s32.totalorder %s24, 1
      %p136 = por %p134, %p135
      %p138 = scmp.ne.s32.totalorder %s123, %s137
      %p139 = scmp.eq.s32.totalorder %s24, 0
      %p140 = por %p138, %p139
      %s142 = sadd.s32 %s141, 1
      %p145 = scmp.eq.s32.totalorder %s18, 1
      %p146 = scmp.ne.s32.totalorder %s141, %s143
      %p147 = scmp.eq.s32.totalorder %s18, 0
      %p148 = por %p146, %p147
      %p149 = scmp.ne.s32.totalorder %s141, %s143
      %p150 = scmp.eq.s32.totalorder %s23, 1
      %p151 = por %p149, %p150
      %p152 = scmp.ne.s32.totalorder %s143, %s144
      %p153 = scmp.eq.s32.totalorder %s23, 0
      %p154 = por %p152, %p153
      %p155 = scmp.ne.s32.totalorder %s143, %s144
      %p156 = scmp.eq.s32.totalorder %s24, 1
      %p157 = por %p155, %p156
      %p159 = scmp.ne.s32.totalorder %s144, %s158
      %p160 = scmp.eq.s32.totalorder %s24, 0
      %p161 = por %p159, %p160
      %s163 = sadd.s32 %s162, 1
      %p166 = scmp.eq.s32.totalorder %s18, 1
      %p167 = scmp.ne.s32.totalorder %s162, %s164
      %p168 = scmp.eq.s32.totalorder %s18, 0
      %p169 = por %p167, %p168
      %p170 = scmp.ne.s32.totalorder %s162, %s164
      %p171 = scmp.eq.s32.totalorder %s23, 1
      %p172 = por %p170, %p171
      %p173 = scmp.ne.s32.totalorder %s164, %s165
      %p174 = scmp.eq.s32.totalorder %s23, 0
      %p175 = por %p173, %p174
      %p176 = scmp.ne.s32.totalorder %s164, %s165
      %p177 = scmp.eq.s32.totalorder %s24, 1
      %p178 = por %p176, %p177
      %p180 = scmp.ne.s32.totalorder %s165, %s179
      %p181 = scmp.eq.s32.totalorder %s24, 0
      %p182 = por %p180, %p181
      %s184 = sadd.s32 %s183, 1
      %p187 = scmp.eq.s32.totalorder %s18, 1
      %p188 = scmp.ne.s32.totalorder %s183, %s185
      %p189 = scmp.eq.s32.totalorder %s18, 0
      %p190 = por %p188, %p189
      %p191 = scmp.ne.s32.totalorder %s183, %s185
      %p192 = scmp.eq.s32.totalorder %s23, 1
      %p193 = por %p191, %p192
      %p194 = scmp.ne.s32.totalorder %s185, %s186
      %p195 = scmp.eq.s32.totalorder %s23, 0
      %p196 = por %p194, %p195
      %p197 = scmp.ne.s32.totalorder %s185, %s186
      %p198 = scmp.eq.s32.totalorder %s24, 1
      %p199 = por %p197, %p198
      %p201 = scmp.ne.s32.totalorder %s186, %s200
      %p202 = scmp.eq.s32.totalorder %s24, 0
      %p203 = por %p201, %p202
      %s205 = sadd.s32 %s204, 1
      %p208 = scmp.eq.s32.totalorder %s18, 1
      %p209 = scmp.ne.s32.totalorder %s204, %s206
      %p210 = scmp.eq.s32.totalorder %s18, 0
      %p211 = por %p209, %p210
      %p212 = scmp.ne.s32.totalorder %s204, %s206
      %p213 = scmp.eq.s32.totalorder %s23, 1
      %p214 = por %p212, %p213
      %p215 = scmp.ne.s32.totalorder %s206, %s207
      %p216 = scmp.eq.s32.totalorder %s23, 0
      %p217 = por %p215, %p216
      %p218 = scmp.ne.s32.totalorder %s206, %s207
      %p219 = scmp.eq.s32.totalorder %s24, 1
      %p220 = por %p218, %p219
      %p222 = scmp.ne.s32.totalorder %s207, %s221
      %p223 = scmp.eq.s32.totalorder %s24, 0
      %p224 = por %p222, %p223
      %s226 = sadd.s32 %s225, 1
      %p229 = scmp.eq.s32.totalorder %s18, 1
      %p230 = scmp.ne.s32.totalorder %s225, %s227
      %p231 = scmp.eq.s32.totalorder %s18, 0
      %p232 = por %p230, %p231
      %p233 = scmp.ne.s32.totalorder %s225, %s227
      %p234 = scmp.eq.s32.totalorder %s23, 1
      %p235 = por %p233, %p234
      %p236 = scmp.ne.s32.totalorder %s227, %s228
      %p237 = scmp.eq.s32.totalorder %s23, 0
      %p238 = por %p236, %p237
      %p239 = scmp.ne.s32.totalorder %s227, %s228
      %p240 = scmp.eq.s32.totalorder %s24, 1
      %p241 = por %p239, %p240
      %p243 = scmp.ne.s32.totalorder %s228, %s242
      %p244 = scmp.eq.s32.totalorder %s24, 0
      %p245 = por %p243, %p244
      %s246 = ssub.s32 %s18, %s25
      %p247 = scmp.eq.s32.totalorder %s246, 0
      %s249 = sadd.s32 %s248, 1
      %s250 = scalar_select %p247, %s248, %s249
      %p253 = pneg %p247
      %p254 = scmp.eq.s32.totalorder %s18, 1
      %p255 = por %p253, %p254
      %p256 = scmp.ne.s32.totalorder %s248, %s251
      %p257 = scmp.eq.s32.totalorder %s18, 0
      %p258 = por %p256, %p257
      %p259 = scmp.ne.s32.totalorder %s248, %s251
      %p260 = scmp.eq.s32.totalorder %s23, 1
      %p261 = por %p259, %p260
      %p262 = scmp.ne.s32.totalorder %s251, %s252
      %p263 = scmp.eq.s32.totalorder %s23, 0
      %p264 = por %p262, %p263
      %p265 = scmp.ne.s32.totalorder %s251, %s252
      %p266 = scmp.eq.s32.totalorder %s24, 1
      %p267 = por %p265, %p266
      %p269 = scmp.ne.s32.totalorder %s252, %s268
      %p270 = scmp.eq.s32.totalorder %s24, 0
      %p271 = por %p269, %p270
      %p272 = scmp.le.s32.totalorder 1, %s18
      %p273 = scmp.lt.s32.totalorder %s18, 3
      %p274 = pnand %p272, %p273
      %p275 = pneg %p274
      // Predicated region
      $region9: #{quaternion_decoder_layer.4} parent=5 // pred_check
        _
      $region10: #{quaternion_decoder_layer.4} parent=5 // pred_check_branch
        %277 = sbr.rel (%p274) target = $region12
      $region11: #{quaternion_decoder_layer.4} parent=5 // pred_region
        %s278 = ssub.s32 %s18, 1
        // Predicated region
        $region13: #{quaternion_decoder_layer.4} parent=11 // pred_check
          %p279 = pneg %p91
        $region14: #{quaternion_decoder_layer.4} parent=11 // pred_check_branch
          %281 = sbr.rel (%p279) target = $region16
        $region15: #{quaternion_decoder_layer.4} parent=11 // pred_region
          _
        $region16: #{quaternion_decoder_layer.4} parent=11 // pred_fallthru
          _
        // Predicated region
        $region17: #{quaternion_decoder_layer.4} parent=11 // pred_check
          %p282 = pneg %p112
        $region18: #{quaternion_decoder_layer.4} parent=11 // pred_check_branch
          %284 = sbr.rel (%p282) target = $region20
        $region19: #{quaternion_decoder_layer.4} parent=11 // pred_region
          _
        $region20: #{quaternion_decoder_layer.4} parent=11 // pred_fallthru
          _
        // Predicated region
        $region21: #{quaternion_decoder_layer.4} parent=11 // pred_check
          %p285 = pneg %p133
        $region22: #{quaternion_decoder_layer.4} parent=11 // pred_check_branch
          %287 = sbr.rel (%p285) target = $region24
        $region23: #{quaternion_decoder_layer.4} parent=11 // pred_region
          %289 = vsyncadd [#allocation3], 0
          %s290 = sshll.u32 %s4, 4
          %s291 = int_to_ptr.hbm [resolvable:$true] %s290
          %s292 = sshll.u32 [#allocation2], 4
          %s293 = int_to_ptr.vmem [resolvable:$true] %s292
          %298 = dma.hbm_to_vmem [thread:$0]  %s291, 1024, %s293, [#allocation3], 128, 128, 8
        $region24: #{quaternion_decoder_layer.4} parent=11 // pred_fallthru
          _
        // Predicated region
        $region25: #{quaternion_decoder_layer.4} parent=11 // pred_check
          %p299 = pneg %p154
        $region26: #{quaternion_decoder_layer.4} parent=11 // pred_check_branch
          %301 = sbr.rel (%p299) target = $region28
        $region27: #{quaternion_decoder_layer.4} parent=11 // pred_region
          _
        $region28: #{quaternion_decoder_layer.4} parent=11 // pred_fallthru
          _
        // Predicated region
        $region29: #{quaternion_decoder_layer.4} parent=11 // pred_check
          %p302 = pneg %p175
        $region30: #{quaternion_decoder_layer.4} parent=11 // pred_check_branch
          %304 = sbr.rel (%p302) target = $region32
        $region31: #{quaternion_decoder_layer.4} parent=11 // pred_region
          %306 = vsyncadd [#allocation5], 0
          %s307 = sshll.u32 %s6, 4
          %s308 = int_to_ptr.hbm [resolvable:$true] %s307
          %s309 = sshll.u32 [#allocation4], 4
          %s310 = int_to_ptr.vmem [resolvable:$true] %s309
          %315 = dma.hbm_to_vmem [thread:$0]  %s308, 1024, %s310, [#allocation5], 128, 128, 8
        $region32: #{quaternion_decoder_layer.4} parent=11 // pred_fallthru
          _
        // Predicated region
        $region33: #{quaternion_decoder_layer.4} parent=11 // pred_check
          %p316 = pneg %p196
        $region34: #{quaternion_decoder_layer.4} parent=11 // pred_check_branch
          %318 = sbr.rel (%p316) target = $region36
        $region35: #{quaternion_decoder_layer.4} parent=11 // pred_region
          _
        $region36: #{quaternion_decoder_layer.4} parent=11 // pred_fallthru
          _
        // Predicated region
        $region37: #{quaternion_decoder_layer.4} parent=11 // pred_check
          %p319 = pneg %p217
        $region38: #{quaternion_decoder_layer.4} parent=11 // pred_check_branch
          %321 = sbr.rel (%p319) target = $region40
        $region39: #{quaternion_decoder_layer.4} parent=11 // pred_region
          _
        $region40: #{quaternion_decoder_layer.4} parent=11 // pred_fallthru
          _
        // Predicated region
        $region41: #{quaternion_decoder_layer.4} parent=11 // pred_check
          %p322 = pneg %p238
        $region42: #{quaternion_decoder_layer.4} parent=11 // pred_check_branch
          %324 = sbr.rel (%p322) target = $region44
        $region43: #{quaternion_decoder_layer.4} parent=11 // pred_region
          _
        $region44: #{quaternion_decoder_layer.4} parent=11 // pred_fallthru
          _
      $region12: #{quaternion_decoder_layer.4} parent=5 // pred_fallthru
        _
      %p325 = scmp.lt.s32.totalorder %s18, 2
      // Predicated region
      $region45: #{quaternion_decoder_layer.4} parent=5 // pred_check
        %p326 = pneg %p325
      $region46: #{quaternion_decoder_layer.4} parent=5 // pred_check_branch
        %328 = sbr.rel (%p326) target = $region48
      $region47: #{quaternion_decoder_layer.4} parent=5 // pred_region
        // Predicated region
        $region49: #{quaternion_decoder_layer.4} parent=47 // pred_check
          %p329 = pneg %p38
        $region50: #{quaternion_decoder_layer.4} parent=47 // pred_check_branch
          %331 = sbr.rel (%p329) target = $region52
        $region51: #{quaternion_decoder_layer.4} parent=47 // pred_region
          %p332 = scmp.lt.s32.totalorder %s18, 1
          %s333 = scalar_select %p332, %s18, 1
          %s334 = smul.addr %s333, 8
          %s335 = scalar_lea.vmem %s0, %s334
        $region52: #{quaternion_decoder_layer.4} parent=47 // pred_fallthru
          _
        // Predicated region
        $region53: #{quaternion_decoder_layer.4} parent=47 // pred_check
          %p336 = pneg %p64
        $region54: #{quaternion_decoder_layer.4} parent=47 // pred_check_branch
          %338 = sbr.rel (%p336) target = $region56
        $region55: #{quaternion_decoder_layer.4} parent=47 // pred_region
          %p339 = scmp.lt.s32.totalorder %s18, 1
          %s340 = scalar_select %p339, %s18, 1
          %s341 = smul.addr %s340, 2
          %s342 = smul.addr %s341, 8
          %s343 = scalar_lea.vmem %s1, %s342
        $region56: #{quaternion_decoder_layer.4} parent=47 // pred_fallthru
          _
      $region48: #{quaternion_decoder_layer.4} parent=5 // pred_fallthru
        _
      %p344 = scmp.le.s32.totalorder 1, %s18
      %p345 = scmp.lt.s32.totalorder %s18, 3
      %p346 = pnand %p344, %p345
      %p347 = pneg %p346
      // Predicated region
      $region57: #{quaternion_decoder_layer.4} parent=5 // pred_check
        _
      $region58: #{quaternion_decoder_layer.4} parent=5 // pred_check_branch
        %349 = sbr.rel (%p346) target = $region60
      $region59: #{quaternion_decoder_layer.4} parent=5 // pred_region
        %s350 = ssub.s32 %s18, 1
        // Predicated region
        $region61: #{quaternion_decoder_layer.4} parent=59 // pred_check
          %p351 = pneg %p133
        $region62: #{quaternion_decoder_layer.4} parent=59 // pred_check_branch
          %353 = sbr.rel (%p351) target = $region64
        $region63: #{quaternion_decoder_layer.4} parent=59 // pred_region
          %355 = dma.done [#allocation3], 1024
        $region64: #{quaternion_decoder_layer.4} parent=59 // pred_fallthru
          _
        // Predicated region
        $region65: #{quaternion_decoder_layer.4} parent=59 // pred_check
          %p356 = pneg %p175
        $region66: #{quaternion_decoder_layer.4} parent=59 // pred_check_branch
          %358 = sbr.rel (%p356) target = $region68
        $region67: #{quaternion_decoder_layer.4} parent=59 // pred_region
          %360 = dma.done [#allocation5], 1024
        $region68: #{quaternion_decoder_layer.4} parent=59 // pred_fallthru
          _
        %p361 = scmp.lt.s32.totalorder %s23, 1
        %s362 = scalar_select %p361, %s23, 1
        %s363 = smul.addr %s362, 8
        %s364 = scalar_lea.vmem %s0, %s363
        %p365 = pneg %p44
        %p366 = pneg %p41
        %p367 = scmp.lt.s32.totalorder %s23, 1
        %s368 = scalar_select %p367, %s23, 1
        %s369 = smul.addr %s368, 2
        %s370 = smul.addr %s369, 8
        %s371 = scalar_lea.vmem %s1, %s370
        %p372 = pneg %p70
        %p373 = pneg %p67
        %p374 = pneg %p91
        %p375 = pneg %p88
        %p376 = pneg %p112
        %p377 = pneg %p109
        %p378 = pneg %p133
        %p379 = pneg %p130
        %p380 = pneg %p154
        %p381 = pneg %p151
        %p382 = pneg %p175
        %p383 = pneg %p172
        %p384 = pneg %p196
        %p385 = pneg %p193
        %p386 = pneg %p217
        %p387 = pneg %p214
        %p388 = pneg %p238
        %p389 = pneg %p235
        %p390 = pneg %p264
        %p391 = pneg %p261
        %p392 = scmp.lt.s32.totalorder %s23, 1
        %s393 = scalar_select %p392, %s23, 1
        %s394 = smul.addr %s393, 8
        %s395 = scalar_lea.vmem %s10, %s394
        %p396 = scmp.lt.s32.totalorder %s23, 1
        %s397 = scalar_select %p396, %s23, 1
        %s398 = smul.addr %s397, 8
        %s399 = scalar_lea.vmem %s0, %s398
        %p400 = scmp.lt.s32.totalorder %s23, 1
        %s401 = scalar_select %p400, %s23, 1
        %s402 = smul.addr %s401, 2
        %s403 = smul.addr %s402, 8
        %s404 = scalar_lea.vmem %s1, %s403
        %p405 = scmp.lt.s32.totalorder %s23, 1
        %s406 = scalar_select %p405, %s23, 1
        %s407 = smul.addr %s406, 8
        %s408 = scalar_lea.vmem %s10, %s407
        %v409 = vld [vmem:[%s399] sm:$0xff]
        %v410 = vld [vmem:[%s404] sm:$0xff]
        %v411 = vld [vmem:[%s404 + $0x8] sm:$0xf]
        %v412 = vld [vmem:[%s2] sm:$0xff]
        %v413 = vld [vmem:[%s2 + $0x8] sm:$0xff]
        %v414 = vld [vmem:[%s2 + $0x10] sm:$0xff]
        %v415 = vld [vmem:[%s2 + $0x18] sm:$0xff]
        %v416 = vld [vmem:[%s2 + $0x20] sm:$0xff]
        %v417 = vld [vmem:[%s2 + $0x28] sm:$0xff]
        %v418 = vld [vmem:[%s2 + $0x30] sm:$0xff]
        %v419 = vld [vmem:[%s2 + $0x38] sm:$0xff]
        %v420 = vld [vmem:[%s3] sm:$0x1]
        %v422 = vperm.slane %v420, 0
        %vm424 = vcmask 523264
        %v426 = vsel %vm424, %v409, 0
        %428 = vmatpush.msra.mxu0 0.0
        %429 = vmatpush.msra.mxu0 0.0
        %430 = vmatpush.msra.mxu0 0.0
        %431 = vmatpush.msra.mxu0 0.0
        %432 = vmatpush.msra.mxu0 0.0
        %433 = vmatpush.msra.mxu0 0.0
        %434 = vmatpush.msra.mxu0 0.0
        %435 = vmatpush.msra.mxu0 0.0
        %436 = vmatpush.msra.mxu0 %v419
        %437 = vmatpush.msra.mxu0 %v418
        %438 = vmatpush.msra.mxu0 %v417
        %439 = vmatpush.msra.mxu0 %v416
        %440 = vmatpush.msra.mxu0 %v415
        %441 = vmatpush.msra.mxu0 %v414
        %442 = vmatpush.msra.mxu0 %v413
        %443 = vmatpush.msra.mxu0 %v412
        %444 = vmatmul.f32.gmra.mxu0 %v426
        %v445 = vpop.f32.mrf.mxu0
        %v446 = vadd.f32 %v422, %v445
        %447 = vdwg.mxu0
        %v448 = vld [vmem:[#allocation2] sm:$0xff]
        %v449 = vld [vmem:[#allocation2 + $0x8] sm:$0xff]
        %v450 = vld [vmem:[#allocation2 + $0x10] sm:$0xff]
        %v451 = vld [vmem:[#allocation2 + $0x18] sm:$0xff]
        %v452 = vld [vmem:[#allocation2 + $0x20] sm:$0xff]
        %v453 = vld [vmem:[#allocation2 + $0x28] sm:$0xff]
        %v454 = vld [vmem:[#allocation2 + $0x30] sm:$0xff]
        %v455 = vld [vmem:[#allocation2 + $0x38] sm:$0xff]
        %v456 = vld [vmem:[%s5] sm:$0x1]
        %v458 = vperm.slane %v456, 0
        %v461 = vsel %vm424, %v410, 0
        %v464 = vsel %vm424, %v411, 0
        %466 = vmatpush.msra.mxu0 0.0
        %467 = vmatpush.msra.mxu0 0.0
        %468 = vmatpush.msra.mxu0 0.0
        %469 = vmatpush.msra.mxu0 0.0
        %470 = vmatpush.msra.mxu0 0.0
        %471 = vmatpush.msra.mxu0 0.0
        %472 = vmatpush.msra.mxu0 0.0
        %473 = vmatpush.msra.mxu0 0.0
        %474 = vmatpush.msra.mxu0 %v455
        %475 = vmatpush.msra.mxu0 %v454
        %476 = vmatpush.msra.mxu0 %v453
        %477 = vmatpush.msra.mxu0 %v452
        %478 = vmatpush.msra.mxu0 %v451
        %479 = vmatpush.msra.mxu0 %v450
        %480 = vmatpush.msra.mxu0 %v449
        %481 = vmatpush.msra.mxu0 %v448
        %482 = vmatmul.f32.gmra.mxu0 %v461
        %v483 = vpop.f32.mrf.mxu0
        %v484 = vadd.f32 %v458, %v483
        %485 = vmatmul.f32.gmra.mxu0 %v464
        %v486 = vpop.f32.mrf.mxu0
        %v487 = vadd.f32 %v458, %v486
        %488 = vdwg.mxu0
        %v489 = vld [vmem:[#allocation4] sm:$0xff]
        %v490 = vld [vmem:[#allocation4 + $0x8] sm:$0xff]
        %v491 = vld [vmem:[#allocation4 + $0x10] sm:$0xff]
        %v492 = vld [vmem:[#allocation4 + $0x18] sm:$0xff]
        %v493 = vld [vmem:[#allocation4 + $0x20] sm:$0xff]
        %v494 = vld [vmem:[#allocation4 + $0x28] sm:$0xff]
        %v495 = vld [vmem:[#allocation4 + $0x30] sm:$0xff]
        %v496 = vld [vmem:[#allocation4 + $0x38] sm:$0xff]
        %v497 = vld [vmem:[%s7] sm:$0x1]
        %v498 = vld [vmem:[%s8] sm:$0x1]
        %v499 = vld [vmem:[%s9] sm:$0x1]
        %vm500 = vcmask 261120
        %v502 = vsel %vm500, %v446, 0
        %v505 = vsel %vm500, %v484, 0
        %v508 = vsel %vm500, %v487, 0
        %510 = vmatpush.xpose.msra.mxu0 0.0
        %511 = vmatpush.xpose.msra.mxu0 0.0
        %512 = vmatpush.xpose.msra.mxu0 0.0
        %513 = vmatpush.xpose.msra.mxu0 0.0
        %514 = vmatpush.xpose.msra.mxu0 0.0
        %515 = vmatpush.xpose.msra.mxu0 0.0
        %516 = vmatpush.xpose.msra.mxu0 0.0
        %517 = vmatpush.xpose.msra.mxu0 0.0
        %518 = vmatpush.xpose.msra.mxu0 0.0
        %519 = vmatpush.xpose.msra.mxu0 0.0
        %520 = vmatpush.xpose.msra.mxu0 0.0
        %521 = vmatpush.xpose.msra.mxu0 0.0
        %522 = vmatpush.xpose.msra.mxu0 0.0
        %523 = vmatpush.xpose.msra.mxu0 0.0
        %524 = vmatpush.xpose.msra.mxu0 %v508
        %525 = vmatpush.xpose.msra.mxu0 %v505
        %526 = vmatmul.f32.gmra.mxu0 %v502
        %v527 = vpop.f32.mrf.mxu0
        %v528 = vadd.f32 0.0, %v527
        %529 = vdwg.mxu0
        %v530 = vmul.f32 %v528, 0.17677669
        %vm531 = vcmask 97280
        %v532 = vsel %vm531, %v530, -inf
        %533 = vmax.xlane.f32.xlu0 %v532
        %v534 = vpop.xlane.xlu0 %533
        %v535 = vsub.f32 %v530, %v534
        %v536 = vmul.f32 %v535, 1.442695
        %v537 = vpow.pop %v536
        %v538 = vsel %vm531, %v537, 0.0
        %539 = vadd.xlane.f32.xlu0 %v538
        %v540 = vpop.xlane.xlu0 %539
        %v541 = vrcp.pop %v540
        %v542 = vmul.f32 %v537, %v541
        %543 = vrot.lane.b32.xlu0 %v484, 64
        %v544 = vpop.permute.xlu0 %543
        %545 = vrot.lane.b32.xlu0 %v487, 64
        %v546 = vpop.permute.xlu0 %545
        %v549 = vsel %vm531, %v542, 0
        %vm551 = vcmask 1043456
        %v552 = vsel %vm551, %v546, 0
        %554 = vmatpush.msra.mxu0 0.0
        %555 = vmatpush.msra.mxu0 0.0
        %556 = vmatpush.msra.mxu0 0.0
        %557 = vmatpush.msra.mxu0 0.0
        %558 = vmatpush.msra.mxu0 0.0
        %559 = vmatpush.msra.mxu0 0.0
        %560 = vmatpush.msra.mxu0 0.0
        %561 = vmatpush.msra.mxu0 0.0
        %562 = vmatpush.msra.mxu0 0.0
        %563 = vmatpush.msra.mxu0 0.0
        %564 = vmatpush.msra.mxu0 0.0
        %565 = vmatpush.msra.mxu0 0.0
        %566 = vmatpush.msra.mxu0 0.0
        %567 = vmatpush.msra.mxu0 0.0
        %568 = vmatpush.msra.mxu0 %v552
        %569 = vmatpush.msra.mxu0 %v544
        %570 = vmatmul.f32.gmra.mxu0 %v549
        %v571 = vpop.f32.mrf.mxu0
        %v572 = vadd.f32 0.0, %v571
        %573 = vdwg.mxu0
        %574 = vrot.lane.b32.xlu0 %v446, 96
        %v575 = vpop.permute.xlu0 %574
        %576 = vrot.lane.b32.xlu0 %v484, 96
        %v577 = vpop.permute.xlu0 %576
        %578 = vrot.lane.b32.xlu0 %v487, 96
        %v579 = vpop.permute.xlu0 %578
        %v580 = vsel %vm500, %v575, 0
        %v582 = vsel %vm500, %v577, 0
        %v584 = vsel %vm500, %v579, 0
        %586 = vmatpush.xpose.msra.mxu0 0.0
        %587 = vmatpush.xpose.msra.mxu0 0.0
        %588 = vmatpush.xpose.msra.mxu0 0.0
        %589 = vmatpush.xpose.msra.mxu0 0.0
        %590 = vmatpush.xpose.msra.mxu0 0.0
        %591 = vmatpush.xpose.msra.mxu0 0.0
        %592 = vmatpush.xpose.msra.mxu0 0.0
        %593 = vmatpush.xpose.msra.mxu0 0.0
        %594 = vmatpush.xpose.msra.mxu0 0.0
        %595 = vmatpush.xpose.msra.mxu0 0.0
        %596 = vmatpush.xpose.msra.mxu0 0.0
        %597 = vmatpush.xpose.msra.mxu0 0.0
        %598 = vmatpush.xpose.msra.mxu0 0.0
        %599 = vmatpush.xpose.msra.mxu0 0.0
        %600 = vmatpush.xpose.msra.mxu0 %v584
        %601 = vmatpush.xpose.msra.mxu0 %v582
        %602 = vmatmul.f32.gmra.mxu0 %v580
        %v603 = vpop.f32.mrf.mxu0
        %v604 = vadd.f32 0.0, %v603
        %605 = vdwg.mxu0
        %v606 = vmul.f32 %v604, 0.17677669
        %v607 = vsel %vm531, %v606, -inf
        %608 = vmax.xlane.f32.xlu0 %v607
        %v609 = vpop.xlane.xlu0 %608
        %v610 = vsub.f32 %v606, %v609
        %v611 = vmul.f32 %v610, 1.442695
        %v612 = vpow.pop %v611
        %v613 = vsel %vm531, %v612, 0.0
        %614 = vadd.xlane.f32.xlu0 %v613
        %v615 = vpop.xlane.xlu0 %614
        %v616 = vrcp.pop %v615
        %v617 = vmul.f32 %v612, %v616
        %618 = vrot.lane.b32.xlu0 %v484, 32
        %v619 = vpop.permute.xlu0 %618
        %620 = vrot.lane.b32.xlu0 %v487, 32
        %v621 = vpop.permute.xlu0 %620
        %v624 = vsel %vm531, %v617, 0
        %v626 = vsel %vm551, %v621, 0
        %628 = vmatpush.msra.mxu0 0.0
        %629 = vmatpush.msra.mxu0 0.0
        %630 = vmatpush.msra.mxu0 0.0
        %631 = vmatpush.msra.mxu0 0.0
        %632 = vmatpush.msra.mxu0 0.0
        %633 = vmatpush.msra.mxu0 0.0
        %634 = vmatpush.msra.mxu0 0.0
        %635 = vmatpush.msra.mxu0 0.0
        %636 = vmatpush.msra.mxu0 0.0
        %637 = vmatpush.msra.mxu0 0.0
        %638 = vmatpush.msra.mxu0 0.0
        %639 = vmatpush.msra.mxu0 0.0
        %640 = vmatpush.msra.mxu0 0.0
        %641 = vmatpush.msra.mxu0 0.0
        %642 = vmatpush.msra.mxu0 %v626
        %643 = vmatpush.msra.mxu0 %v619
        %644 = vmatmul.f32.gmra.mxu0 %v624
        %v645 = vpop.f32.mrf.mxu0
        %v646 = vadd.f32 0.0, %v645
        %647 = vdwg.mxu0
        %649 = vrot.lane.b32.xlu0 %v646, 32
        %v650 = vpop.permute.xlu0 %649
        %v652 = vsel %vm500, %v572, %v650
        %v654 = vperm.slane %v497, 0
        %v657 = vsel %vm424, %v652, 0
        %659 = vmatpush.msra.mxu0 0.0
        %660 = vmatpush.msra.mxu0 0.0
        %661 = vmatpush.msra.mxu0 0.0
        %662 = vmatpush.msra.mxu0 0.0
        %663 = vmatpush.msra.mxu0 0.0
        %664 = vmatpush.msra.mxu0 0.0
        %665 = vmatpush.msra.mxu0 0.0
        %666 = vmatpush.msra.mxu0 0.0
        %667 = vmatpush.msra.mxu0 %v496
        %668 = vmatpush.msra.mxu0 %v495
        %669 = vmatpush.msra.mxu0 %v494
        %670 = vmatpush.msra.mxu0 %v493
        %671 = vmatpush.msra.mxu0 %v492
        %672 = vmatpush.msra.mxu0 %v491
        %673 = vmatpush.msra.mxu0 %v490
        %674 = vmatpush.msra.mxu0 %v489
        %675 = vmatmul.f32.gmra.mxu0 %v657
        %v676 = vpop.f32.mrf.mxu0
        %v677 = vadd.f32 %v654, %v676
        %678 = vdwg.mxu0
        %v679 = vadd.f32 %v677, %v409
        %v680 = vmul.f32 %v679, %v679
        %682 = vrot.lane.b32.xlu0 %v680, 112
        %v683 = vpop.permute.xlu0 %682
        %v685 = vadd.f32 %v680, %v683
        %686 = vrot.lane.b32.xlu0 %v680, 96
        %v687 = vpop.permute.xlu0 %686
        %v689 = vadd.f32 %v685, %v687
        %690 = vrot.lane.b32.xlu0 %v680, 80
        %v691 = vpop.permute.xlu0 %690
        %v693 = vadd.f32 %v689, %v691
        %v694 = vadd.f32 %v693, 1e-06
        %v695 = vrsqrt.pop %v694
        %v696 = vmul.f32 %v695, %v694
        %v697 = vmul.f32 %v696, %v695
        %v698 = vmul.f32 0.5, %v697
        %v699 = vsub.f32 1.5, %v698
        %v700 = vmul.f32 %v695, %v699
        %v701 = vmul.f32 %v694, %v700
        %vm702 = vcmp.eq.f32.partialorder %v694, inf
        %v703 = vsel %vm702, %v694, %v701
        %vm704 = vcmp.eq.f32.partialorder %v694, 0.0
        %v705 = vand.u32 %v694, 2147483648
        %v706 = vsel %vm704, %v705, %v703
        %v707 = vadd.f32 %v706, 1e-06
        %v708 = vrcp.pop %v707
        %v709 = vmul.f32 %v679, %v708
        %711 = vrot.lane.b32.xlu0 %v708, 16
        %v712 = vpop.permute.xlu0 %711
        %v714 = vmul.f32 %v679, %v712
        %715 = vrot.lane.b32.xlu0 %v708, 32
        %v716 = vpop.permute.xlu0 %715
        %v718 = vmul.f32 %v679, %v716
        %719 = vrot.lane.b32.xlu0 %v708, 48
        %v720 = vpop.permute.xlu0 %719
        %v722 = vmul.f32 %v679, %v720
        %vm723 = vcmask 130048
        %v724 = vsel %vm723, %v709, %v714
        %v725 = vsel %vm500, %v724, %v718
        %vm726 = vcmask 392192
        %v727 = vsel %vm726, %v725, %v722
        %v729 = vperm.slane %v498, 0
        %v731 = vmul.f32 %v729, %v727
        %v733 = vperm.slane %v499, 0
        %v735 = vadd.f32 %v731, %v733
        %736 = vst.msk [vmem:[%s408] sm:$0xff] %vm424, %v735
        %p737 = scmp.lt.s32.totalorder %s23, 1
        %s738 = scalar_select %p737, %s23, 1
        %s739 = smul.addr %s738, 8
        %s740 = scalar_lea.vmem %s10, %s739
        // Predicated region
        $region69: #{quaternion_decoder_layer.4} parent=59 // pred_check
          %p741 = pneg %p261
        $region70: #{quaternion_decoder_layer.4} parent=59 // pred_check_branch
          %743 = sbr.rel (%p741) target = $region72
        $region71: #{quaternion_decoder_layer.4} parent=59 // pred_region
          _
        $region72: #{quaternion_decoder_layer.4} parent=59 // pred_fallthru
          _
      $region60: #{quaternion_decoder_layer.4} parent=5 // pred_fallthru
        _
      %p744 = scmp.le.s32.totalorder 2, %s18
      // Predicated region
      $region73: #{quaternion_decoder_layer.4} parent=5 // pred_check
        %p745 = pneg %p744
      $region74: #{quaternion_decoder_layer.4} parent=5 // pred_check_branch
        %747 = sbr.rel (%p745) target = $region76
      $region75: #{quaternion_decoder_layer.4} parent=5 // pred_region
        %s748 = ssub.s32 %s18, 2
        // Predicated region
        $region77: #{quaternion_decoder_layer.4} parent=75 // pred_check
          %p749 = pneg %p267
        $region78: #{quaternion_decoder_layer.4} parent=75 // pred_check_branch
          %751 = sbr.rel (%p749) target = $region80
        $region79: #{quaternion_decoder_layer.4} parent=75 // pred_region
          %p752 = scmp.lt.s32.totalorder %s24, 1
          %s753 = scalar_select %p752, %s24, 1
          %s754 = smul.addr %s753, 8
          %s755 = scalar_lea.vmem %s10, %s754
        $region80: #{quaternion_decoder_layer.4} parent=75 // pred_fallthru
          _
      $region76: #{quaternion_decoder_layer.4} parent=5 // pred_fallthru
        _
    $region6: #{quaternion_decoder_layer.4} parent=1 // loop_footer
      %s22 = sadd.s32 1, %s18
    $region7: #{quaternion_decoder_layer.4} parent=1 // loop_footer_branch
      %17 = sbr.rel target = $region3
    $region8: #{quaternion_decoder_layer.4} parent=1 // loop_exit
      _
    %756 = vsyncpa [#allocation3], 1
    %s757 = scalar_lea.sflag [#allocation3], 1
    %758 = vsyncpa %s757, 1
    %759 = vsyncpa [#allocation5], 1

</llo_original>
